<compile_context>
chip_gen: v5e
topology: v5e:2x2
jax: 0.10.0
libtpu: 0.0.40
codegen_flags: <defaults>
</compile_context>

<pallas_src>
import functools
import math

import jax
import jax.numpy as jnp
from jax import lax
from jax.experimental import pallas as pl
from jax.experimental.pallas import tpu as pltpu


def _round_up(x, m):
    return (x + m - 1) // m * m


def _mha_kernel(mask_ref, q_ref, k_ref, v_ref,
                wq_ref, bq_ref, wk_ref, bk_ref, wv_ref, bv_ref,
                wf_ref, bf_ref,
                out_ref, attn_ref,
                *, head_count, dim_per_head, scale):
    """One grid step = (one batch element, one query tile).

    mask_ref : VMEM f32  [tQ, Sp]   1.0 where the score must be masked
    q_ref    : VMEM f32  [tQ, D]
    k_ref    : VMEM f32  [Sp, D]
    v_ref    : VMEM f32  [Sp, D]
    w*_ref   : VMEM bf16 [D, D] / [D, Dp]   (transposed nn.Linear weights)
    b*_ref   : VMEM f32  [1, D] / [1, Dp]
    out_ref  : VMEM f32  [tQ, Dp]
    attn_ref : VMEM f32  [tQ, Sp]   (head-0 attention weights)
    """
    f32 = jnp.float32
    bf16 = jnp.bfloat16

    q_in = q_ref[...]
    k_in = k_ref[...]
    v_in = v_ref[...]
    mask = mask_ref[...]

    def project(x, w_ref, b_ref):
        # bf16 operands, f32 accumulation on the MXU.
        y = jnp.dot(x.astype(bf16), w_ref[...], preferred_element_type=f32)
        return y + b_ref[...]

    q_up = project(q_in, wq_ref, bq_ref) * f32(scale)   # [tQ, D]
    k_up = project(k_in, wk_ref, bk_ref)                # [Sp, D]
    v_up = project(v_in, wv_ref, bv_ref)                # [Sp, D]

    neg_fill = f32(-1e18)
    ctx_heads = []
    attn_head0 = None
    for h in range(head_count):
        sl = slice(h * dim_per_head, (h + 1) * dim_per_head)
        q_h = q_up[:, sl].astype(bf16)      # [tQ, dh]
        k_h = k_up[:, sl].astype(bf16)      # [Sp, dh]
        v_h = v_up[:, sl].astype(bf16)      # [Sp, dh]

        # scores = q_h @ k_h^T without materializing a transpose.
        s = lax.dot_general(q_h, k_h,
                            dimension_numbers=(((1,), (1,)), ((), ())),
                            preferred_element_type=f32)       # [tQ, Sp]
        s = jnp.where(mask > 0.5, neg_fill, s)

        # softmax over keys; elementwise math kept in f32.
        m = jnp.max(s, axis=-1, keepdims=True)
        e = jnp.exp(s - m)
        p = e * pl.reciprocal(jnp.sum(e, axis=-1, keepdims=True), approx=True)
        if h == 0:
            attn_head0 = p

        # TODO(synk): nn.Dropout(attn) is identity at inference; training-time
        # RNG dropout is not implemented in-kernel.
        ctx_heads.append(jnp.dot(p.astype(bf16), v_h,
                                 preferred_element_type=f32))  # [tQ, dh]

    ctx = jnp.concatenate(ctx_heads, axis=-1)                  # [tQ, D]
    out = jnp.dot(ctx.astype(bf16), wf_ref[...],
                  preferred_element_type=f32) + bf_ref[...]    # [tQ, Dp]

    out_ref[...] = out
    attn_ref[...] = attn_head0


def multi_headed_attention(key, value, query, mask, params, head_count):
    """Pallas forward for MultiHeadedAttention.

    key/value : f32 [B, S, D]
    query     : f32 [B, Q, D]
    mask      : bool [B, Q, S], True where scores must be masked (-1e18)
    params    : dict of PyTorch-layout weights (y = x @ W^T + b):
        wk, wv, wq, wf : [D, D];  bk, bv, bq, bf : [D]
    Returns (output [B, Q, D], top_attn [B, Q, S]).
    """
    B, S, D = key.shape
    Q = query.shape[1]
    assert D % head_count == 0
    dh = D // head_count
    scale = 1.0 / math.sqrt(dh)

    # ---- padding for lane-dense tiles / outputs ----
    S_pad = _round_up(S, 128)
    D_pad = _round_up(D, 128)
    if Q <= 128:
        Q_pad = _round_up(Q, 8)
        tq = Q_pad
    else:
        Q_pad = _round_up(Q, 128)
        tq = 128

    key_p = jnp.pad(key, ((0, 0), (0, S_pad - S), (0, 0)))
    value_p = jnp.pad(value, ((0, 0), (0, S_pad - S), (0, 0)))
    query_p = jnp.pad(query, ((0, 0), (0, Q_pad - Q), (0, 0)))
    mask_p = jnp.pad(mask.astype(jnp.float32),
                     ((0, 0), (0, Q_pad - Q), (0, S_pad - S)),
                     constant_values=1.0)      # padded keys / query rows masked

    # Transposed weights so the kernel right-multiplies; bf16 MXU operands.
    wq_t = params["wq"].T.astype(jnp.bfloat16)
    wk_t = params["wk"].T.astype(jnp.bfloat16)
    wv_t = params["wv"].T.astype(jnp.bfloat16)
    wf_t = jnp.pad(params["wf"].T, ((0, 0), (0, D_pad - D))).astype(jnp.bfloat16)
    bq = params["bq"].reshape(1, D).astype(jnp.float32)
    bk = params["bk"].reshape(1, D).astype(jnp.float32)
    bv = params["bv"].reshape(1, D).astype(jnp.float32)
    bfin = jnp.pad(params["bf"], (0, D_pad - D)).reshape(1, D_pad).astype(jnp.float32)

    kernel = functools.partial(_mha_kernel, head_count=head_count,
                               dim_per_head=dh, scale=scale)

    grid = (B, Q_pad // tq)
    const = lambda b, qt: (0, 0)   # weights: constant index map -> fetched once

    out_p, attn_p = pl.pallas_call(
        kernel,
        out_shape=(
            jax.ShapeDtypeStruct((B, Q_pad, D_pad), jnp.float32),
            jax.ShapeDtypeStruct((B, Q_pad, S_pad), jnp.float32),
        ),
        grid_spec=pltpu.PrefetchScalarGridSpec(
            num_scalar_prefetch=0,
            grid=grid,
            in_specs=[
                pl.BlockSpec((None, tq, S_pad), lambda b, qt: (b, qt, 0)),  # mask
                pl.BlockSpec((None, tq, D), lambda b, qt: (b, qt, 0)),      # query
                pl.BlockSpec((None, S_pad, D), lambda b, qt: (b, 0, 0)),    # key
                pl.BlockSpec((None, S_pad, D), lambda b, qt: (b, 0, 0)),    # value
                pl.BlockSpec((D, D), const),        # Wq^T
                pl.BlockSpec((1, D), const),        # bq
                pl.BlockSpec((D, D), const),        # Wk^T
                pl.BlockSpec((1, D), const),        # bk
                pl.BlockSpec((D, D), const),        # Wv^T
                pl.BlockSpec((1, D), const),        # bv
                pl.BlockSpec((D, D_pad), const),    # Wf^T (zero-padded cols)
                pl.BlockSpec((1, D_pad), const),    # bf
            ],
            out_specs=[
                pl.BlockSpec((None, tq, D_pad), lambda b, qt: (b, qt, 0)),
                pl.BlockSpec((None, tq, S_pad), lambda b, qt: (b, qt, 0)),
            ],
        ),
        compiler_params=pltpu.CompilerParams(
            dimension_semantics=("parallel", "parallel"),
            vmem_limit_bytes=48 * 1024 * 1024,
        ),
    )(mask_p, query_p, key_p, value_p,
      wq_t, bq, wk_t, bk, wv_t, bv, wf_t, bfin)

    # Slice the lane padding back off.
    return out_p[:, :Q, :D], attn_p[:, :Q, :S]


def _reference(key, value, query, mask, params, head_count):
    """Pure-JAX f32 reference mirroring the PyTorch module."""
    B, S, D = key.shape
    Q = query.shape[1]
    dh = D // head_count

    def linear(x, w, b):
        return jnp.einsum('bld,ed->ble', x, w) + b

    def to_heads(x):
        return x.reshape(B, -1, head_count, dh).transpose(0, 2, 1, 3)

    k_up = to_heads(linear(key, params['wk'], params['bk']))
    v_up = to_heads(linear(value, params['wv'], params['bv']))
    q_up = to_heads(linear(query, params['wq'], params['bq'])) / math.sqrt(dh)

    scores = jnp.einsum('bhqd,bhkd->bhqk', q_up, k_up)
    scores = jnp.where(mask[:, None, :, :], -1e18, scores)
    attn = jax.nn.softmax(scores, axis=-1)
    ctx = jnp.einsum('bhqk,bhkd->bhqd', attn, v_up)
    ctx = ctx.transpose(0, 2, 1, 3).reshape(B, Q, D)
    out = jnp.einsum('bqd,ed->bqe', ctx, params['wf']) + params['bf']
    top_attn = attn[:, 0, :, :]
    return out, top_attn


if __name__ == "__main__":
    rng = jax.random.PRNGKey(0)
    keys = jax.random.split(rng, 11)

    batch, key_len, query_len = 2, 8, 8
    head_count, model_dim = 4, 32

    k_in = jax.random.normal(keys[0], (batch, key_len, model_dim), jnp.float32)
    v_in = jax.random.normal(keys[1], (batch, key_len, model_dim), jnp.float32)
    q_in = jax.random.normal(keys[2], (batch, query_len, model_dim), jnp.float32)

    # Padding-style mask: True -> masked (masked_fill convention).
    lengths = jnp.array([key_len, key_len - 3], dtype=jnp.int32)
    mask = (jnp.arange(key_len)[None, None, :] >= lengths[:, None, None])
    mask = jnp.broadcast_to(mask, (batch, query_len, key_len))

    bound = 1.0 / math.sqrt(model_dim)

    def make_linear(kw, kb):
        w = jax.random.uniform(kw, (model_dim, model_dim),
                               minval=-bound, maxval=bound, dtype=jnp.float32)
        b = jax.random.uniform(kb, (model_dim,),
                               minval=-bound, maxval=bound, dtype=jnp.float32)
        return w, b

    wk, bk = make_linear(keys[3], keys[4])
    wv, bv = make_linear(keys[5], keys[6])
    wq, bq = make_linear(keys[7], keys[8])
    wf, bf = make_linear(keys[9], keys[10])
    params = dict(wk=wk, bk=bk, wv=wv, bv=bv, wq=wq, bq=bq, wf=wf, bf=bf)

    out, top_attn = multi_headed_attention(k_in, v_in, q_in, mask, params,
                                           head_count)
    out = jax.block_until_ready(out)
    top_attn = jax.block_until_ready(top_attn)

    ref_out, ref_attn = _reference(k_in, v_in, q_in, mask, params, head_count)

    assert out.shape == (batch, query_len, model_dim)
    assert top_attn.shape == (batch, query_len, key_len)
    # bf16 MXU operands + approx reciprocal -> loosened tolerance vs f32 ref.
    assert jnp.allclose(out, ref_out, atol=5e-2, rtol=5e-2), \
        float(jnp.max(jnp.abs(out - ref_out)))
    assert jnp.allclose(top_attn, ref_attn, atol=5e-2, rtol=5e-2), \
        float(jnp.max(jnp.abs(top_attn - ref_attn)))

    print("KERNEL_OK")
</pallas_src>

<mosaic_0001>
module attributes {stable_mosaic.version = 11 : i64} {
  func.func @_mha_kernel(%arg0: i32, %arg1: i32, %arg2: memref<1x8x128xf32, #tpu.memory_space<vmem>>, %arg3: memref<1x8x32xf32, #tpu.memory_space<vmem>>, %arg4: memref<1x128x32xf32, #tpu.memory_space<vmem>>, %arg5: memref<1x128x32xf32, #tpu.memory_space<vmem>>, %arg6: memref<32x32xbf16, #tpu.memory_space<vmem>>, %arg7: memref<1x32xf32, #tpu.memory_space<vmem>>, %arg8: memref<32x32xbf16, #tpu.memory_space<vmem>>, %arg9: memref<1x32xf32, #tpu.memory_space<vmem>>, %arg10: memref<32x32xbf16, #tpu.memory_space<vmem>>, %arg11: memref<1x32xf32, #tpu.memory_space<vmem>>, %arg12: memref<32x128xbf16, #tpu.memory_space<vmem>>, %arg13: memref<1x128xf32, #tpu.memory_space<vmem>>, %arg14: memref<1x8x128xf32, #tpu.memory_space<vmem>>, %arg15: memref<1x8x128xf32, #tpu.memory_space<vmem>>) attributes {dimension_semantics = [#tpu.dimension_semantics<parallel>, #tpu.dimension_semantics<parallel>], iteration_bounds = array<i64: 2, 1>, scalar_prefetch = 0 : i64, scratch_operands = 0 : i64, tpu.core_type = #tpu.core_type<tc>, window_params = [{transform_indices = @transform_0, window_bounds = array<i64: 1, 8, 128>}, {transform_indices = @transform_1, window_bounds = array<i64: 1, 8, 32>}, {transform_indices = @transform_2, window_bounds = array<i64: 1, 128, 32>}, {transform_indices = @transform_3, window_bounds = array<i64: 1, 128, 32>}, {pipeline_mode = #tpu.pipeline_mode<synchronous>, transform_indices = @transform_4, window_bounds = array<i64: 32, 32>}, {pipeline_mode = #tpu.pipeline_mode<synchronous>, transform_indices = @transform_5, window_bounds = array<i64: 1, 32>}, {pipeline_mode = #tpu.pipeline_mode<synchronous>, transform_indices = @transform_6, window_bounds = array<i64: 32, 32>}, {pipeline_mode = #tpu.pipeline_mode<synchronous>, transform_indices = @transform_7, window_bounds = array<i64: 1, 32>}, {pipeline_mode = #tpu.pipeline_mode<synchronous>, transform_indices = @transform_8, window_bounds = array<i64: 32, 32>}, {pipeline_mode = #tpu.pipeline_mode<synchronous>, transform_indices = @transform_9, window_bounds = array<i64: 1, 32>}, {pipeline_mode = #tpu.pipeline_mode<synchronous>, transform_indices = @transform_10, window_bounds = array<i64: 32, 128>}, {pipeline_mode = #tpu.pipeline_mode<synchronous>, transform_indices = @transform_11, window_bounds = array<i64: 1, 128>}, {transform_indices = @transform_12, window_bounds = array<i64: 1, 8, 128>}, {transform_indices = @transform_13, window_bounds = array<i64: 1, 8, 128>}]} {
    %c0 = arith.constant 0 : index
    %c0_0 = arith.constant 0 : index
    %c0_1 = arith.constant 0 : index
    %0 = vector.load %arg3[%c0, %c0_0, %c0_1] : memref<1x8x32xf32, #tpu.memory_space<vmem>>, vector<1x8x32xf32>
    %1 = vector.shape_cast %0 : vector<1x8x32xf32> to vector<8x32xf32>
    %c0_2 = arith.constant 0 : index
    %c0_3 = arith.constant 0 : index
    %c0_4 = arith.constant 0 : index
    %2 = vector.load %arg4[%c0_2, %c0_3, %c0_4] : memref<1x128x32xf32, #tpu.memory_space<vmem>>, vector<1x128x32xf32>
    %3 = vector.shape_cast %2 : vector<1x128x32xf32> to vector<128x32xf32>
    %c0_5 = arith.constant 0 : index
    %c0_6 = arith.constant 0 : index
    %c0_7 = arith.constant 0 : index
    %4 = vector.load %arg5[%c0_5, %c0_6, %c0_7] : memref<1x128x32xf32, #tpu.memory_space<vmem>>, vector<1x128x32xf32>
    %5 = vector.shape_cast %4 : vector<1x128x32xf32> to vector<128x32xf32>
    %c0_8 = arith.constant 0 : index
    %c0_9 = arith.constant 0 : index
    %c0_10 = arith.constant 0 : index
    %6 = vector.load %arg2[%c0_8, %c0_9, %c0_10] : memref<1x8x128xf32, #tpu.memory_space<vmem>>, vector<1x8x128xf32>
    %7 = vector.shape_cast %6 : vector<1x8x128xf32> to vector<8x128xf32>
    %8 = arith.truncf %1 : vector<8x32xf32> to vector<8x32xbf16>
    %c0_11 = arith.constant 0 : index
    %c0_12 = arith.constant 0 : index
    %9 = vector.load %arg6[%c0_11, %c0_12] : memref<32x32xbf16, #tpu.memory_space<vmem>>, vector<32x32xbf16>
    %cst = arith.constant dense<0.000000e+00> : vector<8x32xf32>
    %10 = tpu.matmul %8, %9, %cst {dimension_numbers = #tpu.dot_dimension_numbers<[1], [0], [0], [1], [0, 0, 1, 1], [], []>} : vector<8x32xbf16>, vector<32x32xbf16>, vector<8x32xf32> -> vector<8x32xf32>
    %c0_13 = arith.constant 0 : index
    %c0_14 = arith.constant 0 : index
    %11 = vector.load %arg7[%c0_13, %c0_14] : memref<1x32xf32, #tpu.memory_space<vmem>>, vector<1x32xf32>
    %12 = vector.broadcast %11 : vector<1x32xf32> to vector<8x32xf32>
    %13 = arith.addf %10, %12 : vector<8x32xf32>
    %cst_15 = arith.constant 0.353553385 : f32
    %14 = vector.broadcast %cst_15 : f32 to vector<8x32xf32>
    %15 = arith.mulf %13, %14 : vector<8x32xf32>
    %16 = arith.truncf %3 : vector<128x32xf32> to vector<128x32xbf16>
    %c0_16 = arith.constant 0 : index
    %c0_17 = arith.constant 0 : index
    %17 = vector.load %arg8[%c0_16, %c0_17] : memref<32x32xbf16, #tpu.memory_space<vmem>>, vector<32x32xbf16>
    %cst_18 = arith.constant dense<0.000000e+00> : vector<128x32xf32>
    %18 = tpu.matmul %16, %17, %cst_18 {dimension_numbers = #tpu.dot_dimension_numbers<[1], [0], [0], [1], [0, 0, 1, 1], [], []>} : vector<128x32xbf16>, vector<32x32xbf16>, vector<128x32xf32> -> vector<128x32xf32>
    %c0_19 = arith.constant 0 : index
    %c0_20 = arith.constant 0 : index
    %19 = vector.load %arg9[%c0_19, %c0_20] : memref<1x32xf32, #tpu.memory_space<vmem>>, vector<1x32xf32>
    %20 = vector.broadcast %19 : vector<1x32xf32> to vector<128x32xf32>
    %21 = arith.addf %18, %20 : vector<128x32xf32>
    %22 = arith.truncf %5 : vector<128x32xf32> to vector<128x32xbf16>
    %c0_21 = arith.constant 0 : index
    %c0_22 = arith.constant 0 : index
    %23 = vector.load %arg10[%c0_21, %c0_22] : memref<32x32xbf16, #tpu.memory_space<vmem>>, vector<32x32xbf16>
    %cst_23 = arith.constant dense<0.000000e+00> : vector<128x32xf32>
    %24 = tpu.matmul %22, %23, %cst_23 {dimension_numbers = #tpu.dot_dimension_numbers<[1], [0], [0], [1], [0, 0, 1, 1], [], []>} : vector<128x32xbf16>, vector<32x32xbf16>, vector<128x32xf32> -> vector<128x32xf32>
    %c0_24 = arith.constant 0 : index
    %c0_25 = arith.constant 0 : index
    %25 = vector.load %arg11[%c0_24, %c0_25] : memref<1x32xf32, #tpu.memory_space<vmem>>, vector<1x32xf32>
    %26 = vector.broadcast %25 : vector<1x32xf32> to vector<128x32xf32>
    %27 = arith.addf %24, %26 : vector<128x32xf32>
    %28 = vector.extract_strided_slice %15 {offsets = [0, 0], sizes = [8, 8], strides = [1, 1]} : vector<8x32xf32> to vector<8x8xf32>
    %29 = arith.truncf %28 : vector<8x8xf32> to vector<8x8xbf16>
    %30 = vector.extract_strided_slice %21 {offsets = [0, 0], sizes = [128, 8], strides = [1, 1]} : vector<128x32xf32> to vector<128x8xf32>
    %31 = arith.truncf %30 : vector<128x8xf32> to vector<128x8xbf16>
    %32 = vector.extract_strided_slice %27 {offsets = [0, 0], sizes = [128, 8], strides = [1, 1]} : vector<128x32xf32> to vector<128x8xf32>
    %33 = arith.truncf %32 : vector<128x8xf32> to vector<128x8xbf16>
    %cst_26 = arith.constant dense<0.000000e+00> : vector<8x128xf32>
    %34 = tpu.matmul %29, %31, %cst_26 {dimension_numbers = #tpu.dot_dimension_numbers<[1], [1], [0], [0], [0, 0, 1, 0], [], []>} : vector<8x8xbf16>, vector<128x8xbf16>, vector<8x128xf32> -> vector<8x128xf32>
    %cst_27 = arith.constant 5.000000e-01 : f32
    %35 = vector.broadcast %cst_27 : f32 to vector<8x128xf32>
    %36 = arith.cmpf ogt, %7, %35 : vector<8x128xf32>
    %cst_28 = arith.constant -9.99999984E+17 : f32
    %37 = vector.broadcast %cst_28 : f32 to vector<8x128xf32>
    %38 = arith.select %36, %37, %34 : vector<8x128xi1>, vector<8x128xf32>
    %cst_29 = arith.constant dense<0xFF800000> : vector<8xf32>
    %39 = vector.multi_reduction <maximumf>, %38, %cst_29 [1] : vector<8x128xf32> to vector<8xf32>
    %40 = vector.shape_cast %39 : vector<8xf32> to vector<8x1xf32>
    %41 = vector.broadcast %40 : vector<8x1xf32> to vector<8x128xf32>
    %42 = arith.subf %38, %41 : vector<8x128xf32>
    %43 = math.exp %42 : vector<8x128xf32>
    %cst_30 = arith.constant dense<0.000000e+00> : vector<8xf32>
    %44 = vector.multi_reduction <add>, %43, %cst_30 [1] : vector<8x128xf32> to vector<8xf32>
    %45 = vector.shape_cast %44 : vector<8xf32> to vector<8x1xf32>
    %46 = tpu.reciprocal %45 {approx = true} : vector<8x1xf32> -> vector<8x1xf32>
    %47 = vector.broadcast %46 : vector<8x1xf32> to vector<8x128xf32>
    %48 = arith.mulf %43, %47 : vector<8x128xf32>
    %49 = arith.truncf %48 : vector<8x128xf32> to vector<8x128xbf16>
    %cst_31 = arith.constant dense<0.000000e+00> : vector<8x8xf32>
    %50 = tpu.matmul %49, %33, %cst_31 {dimension_numbers = #tpu.dot_dimension_numbers<[1], [0], [0], [1], [0, 0, 1, 1], [], []>} : vector<8x128xbf16>, vector<128x8xbf16>, vector<8x8xf32> -> vector<8x8xf32>
    %51 = vector.extract_strided_slice %15 {offsets = [0, 8], sizes = [8, 8], strides = [1, 1]} : vector<8x32xf32> to vector<8x8xf32>
    %52 = arith.truncf %51 : vector<8x8xf32> to vector<8x8xbf16>
    %53 = vector.extract_strided_slice %21 {offsets = [0, 8], sizes = [128, 8], strides = [1, 1]} : vector<128x32xf32> to vector<128x8xf32>
    %54 = arith.truncf %53 : vector<128x8xf32> to vector<128x8xbf16>
    %55 = vector.extract_strided_slice %27 {offsets = [0, 8], sizes = [128, 8], strides = [1, 1]} : vector<128x32xf32> to vector<128x8xf32>
    %56 = arith.truncf %55 : vector<128x8xf32> to vector<128x8xbf16>
    %cst_32 = arith.constant dense<0.000000e+00> : vector<8x128xf32>
    %57 = tpu.matmul %52, %54, %cst_32 {dimension_numbers = #tpu.dot_dimension_numbers<[1], [1], [0], [0], [0, 0, 1, 0], [], []>} : vector<8x8xbf16>, vector<128x8xbf16>, vector<8x128xf32> -> vector<8x128xf32>
    %cst_33 = arith.constant 5.000000e-01 : f32
    %58 = vector.broadcast %cst_33 : f32 to vector<8x128xf32>
    %59 = arith.cmpf ogt, %7, %58 : vector<8x128xf32>
    %cst_34 = arith.constant -9.99999984E+17 : f32
    %60 = vector.broadcast %cst_34 : f32 to vector<8x128xf32>
    %61 = arith.select %59, %60, %57 : vector<8x128xi1>, vector<8x128xf32>
    %cst_35 = arith.constant dense<0xFF800000> : vector<8xf32>
    %62 = vector.multi_reduction <maximumf>, %61, %cst_35 [1] : vector<8x128xf32> to vector<8xf32>
    %63 = vector.shape_cast %62 : vector<8xf32> to vector<8x1xf32>
    %64 = vector.broadcast %63 : vector<8x1xf32> to vector<8x128xf32>
    %65 = arith.subf %61, %64 : vector<8x128xf32>
    %66 = math.exp %65 : vector<8x128xf32>
    %cst_36 = arith.constant dense<0.000000e+00> : vector<8xf32>
    %67 = vector.multi_reduction <add>, %66, %cst_36 [1] : vector<8x128xf32> to vector<8xf32>
    %68 = vector.shape_cast %67 : vector<8xf32> to vector<8x1xf32>
    %69 = tpu.reciprocal %68 {approx = true} : vector<8x1xf32> -> vector<8x1xf32>
    %70 = vector.broadcast %69 : vector<8x1xf32> to vector<8x128xf32>
    %71 = arith.mulf %66, %70 : vector<8x128xf32>
    %72 = arith.truncf %71 : vector<8x128xf32> to vector<8x128xbf16>
    %cst_37 = arith.constant dense<0.000000e+00> : vector<8x8xf32>
    %73 = tpu.matmul %72, %56, %cst_37 {dimension_numbers = #tpu.dot_dimension_numbers<[1], [0], [0], [1], [0, 0, 1, 1], [], []>} : vector<8x128xbf16>, vector<128x8xbf16>, vector<8x8xf32> -> vector<8x8xf32>
    %74 = vector.extract_strided_slice %15 {offsets = [0, 16], sizes = [8, 8], strides = [1, 1]} : vector<8x32xf32> to vector<8x8xf32>
    %75 = arith.truncf %74 : vector<8x8xf32> to vector<8x8xbf16>
    %76 = vector.extract_strided_slice %21 {offsets = [0, 16], sizes = [128, 8], strides = [1, 1]} : vector<128x32xf32> to vector<128x8xf32>
    %77 = arith.truncf %76 : vector<128x8xf32> to vector<128x8xbf16>
    %78 = vector.extract_strided_slice %27 {offsets = [0, 16], sizes = [128, 8], strides = [1, 1]} : vector<128x32xf32> to vector<128x8xf32>
    %79 = arith.truncf %78 : vector<128x8xf32> to vector<128x8xbf16>
    %cst_38 = arith.constant dense<0.000000e+00> : vector<8x128xf32>
    %80 = tpu.matmul %75, %77, %cst_38 {dimension_numbers = #tpu.dot_dimension_numbers<[1], [1], [0], [0], [0, 0, 1, 0], [], []>} : vector<8x8xbf16>, vector<128x8xbf16>, vector<8x128xf32> -> vector<8x128xf32>
    %cst_39 = arith.constant 5.000000e-01 : f32
    %81 = vector.broadcast %cst_39 : f32 to vector<8x128xf32>
    %82 = arith.cmpf ogt, %7, %81 : vector<8x128xf32>
    %cst_40 = arith.constant -9.99999984E+17 : f32
    %83 = vector.broadcast %cst_40 : f32 to vector<8x128xf32>
    %84 = arith.select %82, %83, %80 : vector<8x128xi1>, vector<8x128xf32>
    %cst_41 = arith.constant dense<0xFF800000> : vector<8xf32>
    %85 = vector.multi_reduction <maximumf>, %84, %cst_41 [1] : vector<8x128xf32> to vector<8xf32>
    %86 = vector.shape_cast %85 : vector<8xf32> to vector<8x1xf32>
    %87 = vector.broadcast %86 : vector<8x1xf32> to vector<8x128xf32>
    %88 = arith.subf %84, %87 : vector<8x128xf32>
    %89 = math.exp %88 : vector<8x128xf32>
    %cst_42 = arith.constant dense<0.000000e+00> : vector<8xf32>
    %90 = vector.multi_reduction <add>, %89, %cst_42 [1] : vector<8x128xf32> to vector<8xf32>
    %91 = vector.shape_cast %90 : vector<8xf32> to vector<8x1xf32>
    %92 = tpu.reciprocal %91 {approx = true} : vector<8x1xf32> -> vector<8x1xf32>
    %93 = vector.broadcast %92 : vector<8x1xf32> to vector<8x128xf32>
    %94 = arith.mulf %89, %93 : vector<8x128xf32>
    %95 = arith.truncf %94 : vector<8x128xf32> to vector<8x128xbf16>
    %cst_43 = arith.constant dense<0.000000e+00> : vector<8x8xf32>
    %96 = tpu.matmul %95, %79, %cst_43 {dimension_numbers = #tpu.dot_dimension_numbers<[1], [0], [0], [1], [0, 0, 1, 1], [], []>} : vector<8x128xbf16>, vector<128x8xbf16>, vector<8x8xf32> -> vector<8x8xf32>
    %97 = vector.extract_strided_slice %15 {offsets = [0, 24], sizes = [8, 8], strides = [1, 1]} : vector<8x32xf32> to vector<8x8xf32>
    %98 = arith.truncf %97 : vector<8x8xf32> to vector<8x8xbf16>
    %99 = vector.extract_strided_slice %21 {offsets = [0, 24], sizes = [128, 8], strides = [1, 1]} : vector<128x32xf32> to vector<128x8xf32>
    %100 = arith.truncf %99 : vector<128x8xf32> to vector<128x8xbf16>
    %101 = vector.extract_strided_slice %27 {offsets = [0, 24], sizes = [128, 8], strides = [1, 1]} : vector<128x32xf32> to vector<128x8xf32>
    %102 = arith.truncf %101 : vector<128x8xf32> to vector<128x8xbf16>
    %cst_44 = arith.constant dense<0.000000e+00> : vector<8x128xf32>
    %103 = tpu.matmul %98, %100, %cst_44 {dimension_numbers = #tpu.dot_dimension_numbers<[1], [1], [0], [0], [0, 0, 1, 0], [], []>} : vector<8x8xbf16>, vector<128x8xbf16>, vector<8x128xf32> -> vector<8x128xf32>
    %cst_45 = arith.constant 5.000000e-01 : f32
    %104 = vector.broadcast %cst_45 : f32 to vector<8x128xf32>
    %105 = arith.cmpf ogt, %7, %104 : vector<8x128xf32>
    %cst_46 = arith.constant -9.99999984E+17 : f32
    %106 = vector.broadcast %cst_46 : f32 to vector<8x128xf32>
    %107 = arith.select %105, %106, %103 : vector<8x128xi1>, vector<8x128xf32>
    %cst_47 = arith.constant dense<0xFF800000> : vector<8xf32>
    %108 = vector.multi_reduction <maximumf>, %107, %cst_47 [1] : vector<8x128xf32> to vector<8xf32>
    %109 = vector.shape_cast %108 : vector<8xf32> to vector<8x1xf32>
    %110 = vector.broadcast %109 : vector<8x1xf32> to vector<8x128xf32>
    %111 = arith.subf %107, %110 : vector<8x128xf32>
    %112 = math.exp %111 : vector<8x128xf32>
    %cst_48 = arith.constant dense<0.000000e+00> : vector<8xf32>
    %113 = vector.multi_reduction <add>, %112, %cst_48 [1] : vector<8x128xf32> to vector<8xf32>
    %114 = vector.shape_cast %113 : vector<8xf32> to vector<8x1xf32>
    %115 = tpu.reciprocal %114 {approx = true} : vector<8x1xf32> -> vector<8x1xf32>
    %116 = vector.broadcast %115 : vector<8x1xf32> to vector<8x128xf32>
    %117 = arith.mulf %112, %116 : vector<8x128xf32>
    %118 = arith.truncf %117 : vector<8x128xf32> to vector<8x128xbf16>
    %cst_49 = arith.constant dense<0.000000e+00> : vector<8x8xf32>
    %119 = tpu.matmul %118, %102, %cst_49 {dimension_numbers = #tpu.dot_dimension_numbers<[1], [0], [0], [1], [0, 0, 1, 1], [], []>} : vector<8x128xbf16>, vector<128x8xbf16>, vector<8x8xf32> -> vector<8x8xf32>
    %120 = tpu.concatenate %50, %73, %96, %119 in 1 : vector<8x8xf32>, vector<8x8xf32>, vector<8x8xf32>, vector<8x8xf32> -> vector<8x32xf32>
    %121 = arith.truncf %120 : vector<8x32xf32> to vector<8x32xbf16>
    %c0_50 = arith.constant 0 : index
    %c0_51 = arith.constant 0 : index
    %122 = vector.load %arg12[%c0_50, %c0_51] : memref<32x128xbf16, #tpu.memory_space<vmem>>, vector<32x128xbf16>
    %cst_52 = arith.constant dense<0.000000e+00> : vector<8x128xf32>
    %123 = tpu.matmul %121, %122, %cst_52 {dimension_numbers = #tpu.dot_dimension_numbers<[1], [0], [0], [1], [0, 0, 1, 1], [], []>} : vector<8x32xbf16>, vector<32x128xbf16>, vector<8x128xf32> -> vector<8x128xf32>
    %c0_53 = arith.constant 0 : index
    %c0_54 = arith.constant 0 : index
    %124 = vector.load %arg13[%c0_53, %c0_54] : memref<1x128xf32, #tpu.memory_space<vmem>>, vector<1x128xf32>
    %125 = vector.broadcast %124 : vector<1x128xf32> to vector<8x128xf32>
    %126 = arith.addf %123, %125 : vector<8x128xf32>
    %c0_55 = arith.constant 0 : index
    %c0_56 = arith.constant 0 : index
    %c0_57 = arith.constant 0 : index
    %127 = vector.load %arg14[%c0_55, %c0_56, %c0_57] : memref<1x8x128xf32, #tpu.memory_space<vmem>>, vector<1x8x128xf32>
    %128 = vector.shape_cast %127 : vector<1x8x128xf32> to vector<8x128xf32>
    %129 = vector.shape_cast %126 : vector<8x128xf32> to vector<1x8x128xf32>
    tpu.vector_store %arg14[%c0_55, %c0_56, %c0_57], %129 {strides = array<i32>} : memref<1x8x128xf32, #tpu.memory_space<vmem>>, vector<1x8x128xf32>,
    %c0_58 = arith.constant 0 : index
    %c0_59 = arith.constant 0 : index
    %c0_60 = arith.constant 0 : index
    %130 = vector.load %arg15[%c0_58, %c0_59, %c0_60] : memref<1x8x128xf32, #tpu.memory_space<vmem>>, vector<1x8x128xf32>
    %131 = vector.shape_cast %130 : vector<1x8x128xf32> to vector<8x128xf32>
    %132 = vector.shape_cast %48 : vector<8x128xf32> to vector<1x8x128xf32>
    tpu.vector_store %arg15[%c0_58, %c0_59, %c0_60], %132 {strides = array<i32>} : memref<1x8x128xf32, #tpu.memory_space<vmem>>, vector<1x8x128xf32>,
    return
  }
  func.func @transform_0(%arg0: i32, %arg1: i32) -> (i32, i32, i32) {
    %c0_i32 = arith.constant 0 : i32
    %c0_i32_0 = arith.constant 0 : i32
    return %arg0, %arg1, %c0_i32 : i32, i32, i32
  }
  func.func @transform_1(%arg0: i32, %arg1: i32) -> (i32, i32, i32) {
    %c0_i32 = arith.constant 0 : i32
    %c0_i32_0 = arith.constant 0 : i32
    return %arg0, %arg1, %c0_i32 : i32, i32, i32
  }
  func.func @transform_2(%arg0: i32, %arg1: i32) -> (i32, i32, i32) {
    %c0_i32 = arith.constant 0 : i32
    %c0_i32_0 = arith.constant 0 : i32
    %c0_i32_1 = arith.constant 0 : i32
    return %arg0, %c0_i32, %c0_i32_0 : i32, i32, i32
  }
  func.func @transform_3(%arg0: i32, %arg1: i32) -> (i32, i32, i32) {
    %c0_i32 = arith.constant 0 : i32
    %c0_i32_0 = arith.constant 0 : i32
    %c0_i32_1 = arith.constant 0 : i32
    return %arg0, %c0_i32, %c0_i32_0 : i32, i32, i32
  }
  func.func @transform_4(%arg0: i32, %arg1: i32) -> (i32, i32) {
    %c0_i32 = arith.constant 0 : i32
    %c0_i32_0 = arith.constant 0 : i32
    %c0_i32_1 = arith.constant 0 : i32
    return %c0_i32, %c0_i32_0 : i32, i32
  }
  func.func @transform_5(%arg0: i32, %arg1: i32) -> (i32, i32) {
    %c0_i32 = arith.constant 0 : i32
    %c0_i32_0 = arith.constant 0 : i32
    %c0_i32_1 = arith.constant 0 : i32
    return %c0_i32, %c0_i32_0 : i32, i32
  }
  func.func @transform_6(%arg0: i32, %arg1: i32) -> (i32, i32) {
    %c0_i32 = arith.constant 0 : i32
    %c0_i32_0 = arith.constant 0 : i32
    %c0_i32_1 = arith.constant 0 : i32
    return %c0_i32, %c0_i32_0 : i32, i32
  }
  func.func @transform_7(%arg0: i32, %arg1: i32) -> (i32, i32) {
    %c0_i32 = arith.constant 0 : i32
    %c0_i32_0 = arith.constant 0 : i32
    %c0_i32_1 = arith.constant 0 : i32
    return %c0_i32, %c0_i32_0 : i32, i32
  }
  func.func @transform_8(%arg0: i32, %arg1: i32) -> (i32, i32) {
    %c0_i32 = arith.constant 0 : i32
    %c0_i32_0 = arith.constant 0 : i32
    %c0_i32_1 = arith.constant 0 : i32
    return %c0_i32, %c0_i32_0 : i32, i32
  }
  func.func @transform_9(%arg0: i32, %arg1: i32) -> (i32, i32) {
    %c0_i32 = arith.constant 0 : i32
    %c0_i32_0 = arith.constant 0 : i32
    %c0_i32_1 = arith.constant 0 : i32
    return %c0_i32, %c0_i32_0 : i32, i32
  }
  func.func @transform_10(%arg0: i32, %arg1: i32) -> (i32, i32) {
    %c0_i32 = arith.constant 0 : i32
    %c0_i32_0 = arith.constant 0 : i32
    %c0_i32_1 = arith.constant 0 : i32
    return %c0_i32, %c0_i32_0 : i32, i32
  }
  func.func @transform_11(%arg0: i32, %arg1: i32) -> (i32, i32) {
    %c0_i32 = arith.constant 0 : i32
    %c0_i32_0 = arith.constant 0 : i32
    %c0_i32_1 = arith.constant 0 : i32
    return %c0_i32, %c0_i32_0 : i32, i32
  }
  func.func @transform_12(%arg0: i32, %arg1: i32) -> (i32, i32, i32) {
    %c0_i32 = arith.constant 0 : i32
    %c0_i32_0 = arith.constant 0 : i32
    return %arg0, %arg1, %c0_i32 : i32, i32, i32
  }
  func.func @transform_13(%arg0: i32, %arg1: i32) -> (i32, i32, i32) {
    %c0_i32 = arith.constant 0 : i32
    %c0_i32_0 = arith.constant 0 : i32
    return %arg0, %arg1, %c0_i32 : i32, i32, i32
  }
}

</mosaic_0001>

<llo_original>
// kernel: tpu_custom_call.1
$region0: #{tpu_custom_call.1}
  #allocation0 [shape = 'u32[]', space=smem, size = 0x4, offset = 0x4, fixed_abs, tag = 'smem constant byte address 0x4 - core index']
  #allocation1 [shape = 'u32[72,128]{1,0:T(1,128)}', space=vmem, size = 0x9000, scoped, tag = 'internal scratch']
  %s0 = inlined_call_operand.vmem [shape: f32[2,8,128], index: 0, kind: input, shape index: {}]
  %s1 = inlined_call_operand.vmem [shape: f32[2,8,32], index: 1, kind: input, shape index: {}]
  %s2 = inlined_call_operand.vmem [shape: f32[2,128,32], index: 2, kind: input, shape index: {}]
  %s3 = inlined_call_operand.vmem [shape: f32[2,128,32], index: 3, kind: input, shape index: {}]
  %s4 = inlined_call_operand.vmem [shape: bf16[32,32], index: 4, kind: input, shape index: {}]
  %s5 = inlined_call_operand.vmem [shape: f32[1,32], index: 5, kind: input, shape index: {}]
  %s6 = inlined_call_operand.vmem [shape: bf16[32,32], index: 6, kind: input, shape index: {}]
  %s7 = inlined_call_operand.vmem [shape: f32[1,32], index: 7, kind: input, shape index: {}]
  %s8 = inlined_call_operand.vmem [shape: bf16[32,32], index: 8, kind: input, shape index: {}]
  %s9 = inlined_call_operand.vmem [shape: f32[1,32], index: 9, kind: input, shape index: {}]
  %s10 = inlined_call_operand.vmem [shape: bf16[32,128], index: 10, kind: input, shape index: {}]
  %s11 = inlined_call_operand.vmem [shape: f32[1,128], index: 11, kind: input, shape index: {}]
  %s12 = inlined_call_operand.hbm [shape: f32[2,8,128], index: 12, kind: output, shape index: {0}]
  %s13 = inlined_call_operand.hbm [shape: f32[2,8,128], index: 13, kind: output, shape index: {1}]
  %14 = xla_tuple %s12, %s13
  %s15 = sld [smem:[#allocation0]]
  $region89: #{tpu_custom_call.1} parent=0
    _
  %s17 = ssub.s32 1, %s15
  %s18 = scalar_select 0, %s17, %s15
  $region1: #{tpu_custom_call.1} parent=0
    #allocation2 [shape = 'u8[8192]{0}', space=vmem, size = 0x2000, scoped, tag = 'output window, operand 0']
    #allocation3 [shape = 's32[2]{0}', space=sflag, size = 0x8, scoped, tag = 'scoped memory for tpu_custom_call.1']
    #allocation4 [shape = 'u8[8192]{0}', space=vmem, size = 0x2000, scoped, tag = 'output window, operand 1']
    #allocation5 [shape = 's32[2]{0}', space=sflag, size = 0x8, scoped, tag = 'scoped memory for tpu_custom_call.1']
    %19 = vsyncpa [#allocation3], 0
    %s20 = scalar_lea.sflag [#allocation3], 1
    %21 = vsyncpa %s20, 0
    %22 = vsyncpa [#allocation5], 0
    %s23 = scalar_lea.sflag [#allocation5], 1
    %24 = vsyncpa %s23, 0
    loop: start=0, step=1, limit=4
    $region2: #{tpu_custom_call.1} parent=1 // loop_pre_header
      _
    $region3: #{tpu_custom_call.1} parent=1 // loop_header
      %s26 = sphi 0, %s30
      %p27 = scmp.ge.s32.totalorder %s26, 4
      %s33 = sphi 0, %s45
      %s34 = sphi 0, %s41
      %s35 = sphi 0, %s33
      %s36 = sphi 0, %s34
      %s37 = sphi 0, %s35
      %s38 = sphi 0, %s36
      %s50 = sphi 0, %s52
      %s53 = sphi 0, %s50
      %s54 = sphi 0, %s53
      %s70 = sphi 0, %s54
      %s78 = sphi 0, %s80
      %s81 = sphi 0, %s78
      %s82 = sphi 0, %s81
      %s98 = sphi 0, %s82
      %s104 = sphi 0, %s106
      %s107 = sphi 0, %s104
      %s108 = sphi 0, %s107
      %s124 = sphi 0, %s108
      %s130 = sphi 0, %s132
      %s133 = sphi 0, %s130
      %s134 = sphi 0, %s133
      %s150 = sphi 0, %s134
      %s154 = sphi 0, %s154
      %s156 = sphi 0, %s154
      %s157 = sphi 0, %s156
      %s171 = sphi 0, %s157
      %s175 = sphi 0, %s175
      %s177 = sphi 0, %s175
      %s178 = sphi 0, %s177
      %s192 = sphi 0, %s178
      %s196 = sphi 0, %s196
      %s198 = sphi 0, %s196
      %s199 = sphi 0, %s198
      %s213 = sphi 0, %s199
      %s217 = sphi 0, %s217
      %s219 = sphi 0, %s217
      %s220 = sphi 0, %s219
      %s234 = sphi 0, %s220
      %s238 = sphi 0, %s238
      %s240 = sphi 0, %s238
      %s241 = sphi 0, %s240
      %s255 = sphi 0, %s241
      %s259 = sphi 0, %s259
      %s261 = sphi 0, %s259
      %s262 = sphi 0, %s261
      %s276 = sphi 0, %s262
      %s280 = sphi 0, %s280
      %s282 = sphi 0, %s280
      %s283 = sphi 0, %s282
      %s297 = sphi 0, %s283
      %s301 = sphi 0, %s301
      %s303 = sphi 0, %s301
      %s304 = sphi 0, %s303
      %s318 = sphi 0, %s304
      %s326 = sphi 0, %s328
      %s329 = sphi 0, %s326
      %s330 = sphi 0, %s329
      %s346 = sphi 0, %s330
      %s354 = sphi 0, %s356
      %s357 = sphi 0, %s354
      %s358 = sphi 0, %s357
      %s374 = sphi 0, %s358
    $region4: #{tpu_custom_call.1} parent=1 // loop_header_branch
      %29 = sbr.rel (%p27) target = $region8
    $region5: #{tpu_custom_call.1} parent=1 // loop_body
      %s31 = ssub.s32 %s26, 1
      %s32 = ssub.s32 %s26, 2
      %s39 = sadd.s32 1, %s34
      %p40 = scmp.ge.s32.totalorder %s39, 1
      %s41 = scalar_select %p40, 0, %s39
      %s42 = sadd.s32 1, %s33
      %s43 = scalar_select %p40, %s42, %s33
      %p44 = scmp.ge.s32.totalorder %s43, 2
      %s45 = scalar_select %p44, 0, %s43
      %s46 = ssub.s32 %s33, %s45
      %s47 = ssub.s32 %s34, %s41
      %s48 = sor.u32 %s46, %s47
      %p49 = scmp.eq.s32.totalorder %s48, 0
      %s51 = sadd.s32 %s50, 1
      %s52 = scalar_select %p49, %s50, %s51
      %p55 = pneg %p49
      %p56 = scmp.eq.s32.totalorder %s26, 1
      %p57 = por %p55, %p56
      %p58 = scmp.ne.s32.totalorder %s50, %s53
      %p59 = scmp.eq.s32.totalorder %s26, 0
      %p60 = por %p58, %p59
      %p61 = scmp.ne.s32.totalorder %s50, %s53
      %p62 = scmp.eq.s32.totalorder %s31, 1
      %p63 = por %p61, %p62
      %p64 = scmp.ne.s32.totalorder %s53, %s54
      %p65 = scmp.eq.s32.totalorder %s31, 0
      %p66 = por %p64, %p65
      %p67 = scmp.ne.s32.totalorder %s53, %s54
      %p68 = scmp.eq.s32.totalorder %s32, 1
      %p69 = por %p67, %p68
      %p71 = scmp.ne.s32.totalorder %s54, %s70
      %p72 = scmp.eq.s32.totalorder %s32, 0
      %p73 = por %p71, %p72
      %s74 = ssub.s32 %s33, %s45
      %s75 = ssub.s32 %s34, %s41
      %s76 = sor.u32 %s74, %s75
      %p77 = scmp.eq.s32.totalorder %s76, 0
      %s79 = sadd.s32 %s78, 1
      %s80 = scalar_select %p77, %s78, %s79
      %p83 = pneg %p77
      %p84 = scmp.eq.s32.totalorder %s26, 1
      %p85 = por %p83, %p84
      %p86 = scmp.ne.s32.totalorder %s78, %s81
      %p87 = scmp.eq.s32.totalorder %s26, 0
      %p88 = por %p86, %p87
      %p89 = scmp.ne.s32.totalorder %s78, %s81
      %p90 = scmp.eq.s32.totalorder %s31, 1
      %p91 = por %p89, %p90
      %p92 = scmp.ne.s32.totalorder %s81, %s82
      %p93 = scmp.eq.s32.totalorder %s31, 0
      %p94 = por %p92, %p93
      %p95 = scmp.ne.s32.totalorder %s81, %s82
      %p96 = scmp.eq.s32.totalorder %s32, 1
      %p97 = por %p95, %p96
      %p99 = scmp.ne.s32.totalorder %s82, %s98
      %p100 = scmp.eq.s32.totalorder %s32, 0
      %p101 = por %p99, %p100
      %s102 = ssub.s32 %s33, %s45
      %p103 = scmp.eq.s32.totalorder %s102, 0
      %s105 = sadd.s32 %s104, 1
      %s106 = scalar_select %p103, %s104, %s105
      %p109 = pneg %p103
      %p110 = scmp.eq.s32.totalorder %s26, 1
      %p111 = por %p109, %p110
      %p112 = scmp.ne.s32.totalorder %s104, %s107
      %p113 = scmp.eq.s32.totalorder %s26, 0
      %p114 = por %p112, %p113
      %p115 = scmp.ne.s32.totalorder %s104, %s107
      %p116 = scmp.eq.s32.totalorder %s31, 1
      %p117 = por %p115, %p116
      %p118 = scmp.ne.s32.totalorder %s107, %s108
      %p119 = scmp.eq.s32.totalorder %s31, 0
      %p120 = por %p118, %p119
      %p121 = scmp.ne.s32.totalorder %s107, %s108
      %p122 = scmp.eq.s32.totalorder %s32, 1
      %p123 = por %p121, %p122
      %p125 = scmp.ne.s32.totalorder %s108, %s124
      %p126 = scmp.eq.s32.totalorder %s32, 0
      %p127 = por %p125, %p126
      %s128 = ssub.s32 %s33, %s45
      %p129 = scmp.eq.s32.totalorder %s128, 0
      %s131 = sadd.s32 %s130, 1
      %s132 = scalar_select %p129, %s130, %s131
      %p135 = pneg %p129
      %p136 = scmp.eq.s32.totalorder %s26, 1
      %p137 = por %p135, %p136
      %p138 = scmp.ne.s32.totalorder %s130, %s133
      %p139 = scmp.eq.s32.totalorder %s26, 0
      %p140 = por %p138, %p139
      %p141 = scmp.ne.s32.totalorder %s130, %s133
      %p142 = scmp.eq.s32.totalorder %s31, 1
      %p143 = por %p141, %p142
      %p144 = scmp.ne.s32.totalorder %s133, %s134
      %p145 = scmp.eq.s32.totalorder %s31, 0
      %p146 = por %p144, %p145
      %p147 = scmp.ne.s32.totalorder %s133, %s134
      %p148 = scmp.eq.s32.totalorder %s32, 1
      %p149 = por %p147, %p148
      %p151 = scmp.ne.s32.totalorder %s134, %s150
      %p152 = scmp.eq.s32.totalorder %s32, 0
      %p153 = por %p151, %p152
      %s155 = sadd.s32 %s154, 1
      %p158 = scmp.eq.s32.totalorder %s26, 1
      %p159 = scmp.ne.s32.totalorder %s154, %s156
      %p160 = scmp.eq.s32.totalorder %s26, 0
      %p161 = por %p159, %p160
      %p162 = scmp.ne.s32.totalorder %s154, %s156
      %p163 = scmp.eq.s32.totalorder %s31, 1
      %p164 = por %p162, %p163
      %p165 = scmp.ne.s32.totalorder %s156, %s157
      %p166 = scmp.eq.s32.totalorder %s31, 0
      %p167 = por %p165, %p166
      %p168 = scmp.ne.s32.totalorder %s156, %s157
      %p169 = scmp.eq.s32.totalorder %s32, 1
      %p170 = por %p168, %p169
      %p172 = scmp.ne.s32.totalorder %s157, %s171
      %p173 = scmp.eq.s32.totalorder %s32, 0
      %p174 = por %p172, %p173
      %s176 = sadd.s32 %s175, 1
      %p179 = scmp.eq.s32.totalorder %s26, 1
      %p180 = scmp.ne.s32.totalorder %s175, %s177
      %p181 = scmp.eq.s32.totalorder %s26, 0
      %p182 = por %p180, %p181
      %p183 = scmp.ne.s32.totalorder %s175, %s177
      %p184 = scmp.eq.s32.totalorder %s31, 1
      %p185 = por %p183, %p184
      %p186 = scmp.ne.s32.totalorder %s177, %s178
      %p187 = scmp.eq.s32.totalorder %s31, 0
      %p188 = por %p186, %p187
      %p189 = scmp.ne.s32.totalorder %s177, %s178
      %p190 = scmp.eq.s32.totalorder %s32, 1
      %p191 = por %p189, %p190
      %p193 = scmp.ne.s32.totalorder %s178, %s192
      %p194 = scmp.eq.s32.totalorder %s32, 0
      %p195 = por %p193, %p194
      %s197 = sadd.s32 %s196, 1
      %p200 = scmp.eq.s32.totalorder %s26, 1
      %p201 = scmp.ne.s32.totalorder %s196, %s198
      %p202 = scmp.eq.s32.totalorder %s26, 0
      %p203 = por %p201, %p202
      %p204 = scmp.ne.s32.totalorder %s196, %s198
      %p205 = scmp.eq.s32.totalorder %s31, 1
      %p206 = por %p204, %p205
      %p207 = scmp.ne.s32.totalorder %s198, %s199
      %p208 = scmp.eq.s32.totalorder %s31, 0
      %p209 = por %p207, %p208
      %p210 = scmp.ne.s32.totalorder %s198, %s199
      %p211 = scmp.eq.s32.totalorder %s32, 1
      %p212 = por %p210, %p211
      %p214 = scmp.ne.s32.totalorder %s199, %s213
      %p215 = scmp.eq.s32.totalorder %s32, 0
      %p216 = por %p214, %p215
      %s218 = sadd.s32 %s217, 1
      %p221 = scmp.eq.s32.totalorder %s26, 1
      %p222 = scmp.ne.s32.totalorder %s217, %s219
      %p223 = scmp.eq.s32.totalorder %s26, 0
      %p224 = por %p222, %p223
      %p225 = scmp.ne.s32.totalorder %s217, %s219
      %p226 = scmp.eq.s32.totalorder %s31, 1
      %p227 = por %p225, %p226
      %p228 = scmp.ne.s32.totalorder %s219, %s220
      %p229 = scmp.eq.s32.totalorder %s31, 0
      %p230 = por %p228, %p229
      %p231 = scmp.ne.s32.totalorder %s219, %s220
      %p232 = scmp.eq.s32.totalorder %s32, 1
      %p233 = por %p231, %p232
      %p235 = scmp.ne.s32.totalorder %s220, %s234
      %p236 = scmp.eq.s32.totalorder %s32, 0
      %p237 = por %p235, %p236
      %s239 = sadd.s32 %s238, 1
      %p242 = scmp.eq.s32.totalorder %s26, 1
      %p243 = scmp.ne.s32.totalorder %s238, %s240
      %p244 = scmp.eq.s32.totalorder %s26, 0
      %p245 = por %p243, %p244
      %p246 = scmp.ne.s32.totalorder %s238, %s240
      %p247 = scmp.eq.s32.totalorder %s31, 1
      %p248 = por %p246, %p247
      %p249 = scmp.ne.s32.totalorder %s240, %s241
      %p250 = scmp.eq.s32.totalorder %s31, 0
      %p251 = por %p249, %p250
      %p252 = scmp.ne.s32.totalorder %s240, %s241
      %p253 = scmp.eq.s32.totalorder %s32, 1
      %p254 = por %p252, %p253
      %p256 = scmp.ne.s32.totalorder %s241, %s255
      %p257 = scmp.eq.s32.totalorder %s32, 0
      %p258 = por %p256, %p257
      %s260 = sadd.s32 %s259, 1
      %p263 = scmp.eq.s32.totalorder %s26, 1
      %p264 = scmp.ne.s32.totalorder %s259, %s261
      %p265 = scmp.eq.s32.totalorder %s26, 0
      %p266 = por %p264, %p265
      %p267 = scmp.ne.s32.totalorder %s259, %s261
      %p268 = scmp.eq.s32.totalorder %s31, 1
      %p269 = por %p267, %p268
      %p270 = scmp.ne.s32.totalorder %s261, %s262
      %p271 = scmp.eq.s32.totalorder %s31, 0
      %p272 = por %p270, %p271
      %p273 = scmp.ne.s32.totalorder %s261, %s262
      %p274 = scmp.eq.s32.totalorder %s32, 1
      %p275 = por %p273, %p274
      %p277 = scmp.ne.s32.totalorder %s262, %s276
      %p278 = scmp.eq.s32.totalorder %s32, 0
      %p279 = por %p277, %p278
      %s281 = sadd.s32 %s280, 1
      %p284 = scmp.eq.s32.totalorder %s26, 1
      %p285 = scmp.ne.s32.totalorder %s280, %s282
      %p286 = scmp.eq.s32.totalorder %s26, 0
      %p287 = por %p285, %p286
      %p288 = scmp.ne.s32.totalorder %s280, %s282
      %p289 = scmp.eq.s32.totalorder %s31, 1
      %p290 = por %p288, %p289
      %p291 = scmp.ne.s32.totalorder %s282, %s283
      %p292 = scmp.eq.s32.totalorder %s31, 0
      %p293 = por %p291, %p292
      %p294 = scmp.ne.s32.totalorder %s282, %s283
      %p295 = scmp.eq.s32.totalorder %s32, 1
      %p296 = por %p294, %p295
      %p298 = scmp.ne.s32.totalorder %s283, %s297
      %p299 = scmp.eq.s32.totalorder %s32, 0
      %p300 = por %p298, %p299
      %s302 = sadd.s32 %s301, 1
      %p305 = scmp.eq.s32.totalorder %s26, 1
      %p306 = scmp.ne.s32.totalorder %s301, %s303
      %p307 = scmp.eq.s32.totalorder %s26, 0
      %p308 = por %p306, %p307
      %p309 = scmp.ne.s32.totalorder %s301, %s303
      %p310 = scmp.eq.s32.totalorder %s31, 1
      %p311 = por %p309, %p310
      %p312 = scmp.ne.s32.totalorder %s303, %s304
      %p313 = scmp.eq.s32.totalorder %s31, 0
      %p314 = por %p312, %p313
      %p315 = scmp.ne.s32.totalorder %s303, %s304
      %p316 = scmp.eq.s32.totalorder %s32, 1
      %p317 = por %p315, %p316
      %p319 = scmp.ne.s32.totalorder %s304, %s318
      %p320 = scmp.eq.s32.totalorder %s32, 0
      %p321 = por %p319, %p320
      %s322 = ssub.s32 %s33, %s45
      %s323 = ssub.s32 %s34, %s41
      %s324 = sor.u32 %s322, %s323
      %p325 = scmp.eq.s32.totalorder %s324, 0
      %s327 = sadd.s32 %s326, 1
      %s328 = scalar_select %p325, %s326, %s327
      %p331 = pneg %p325
      %p332 = scmp.eq.s32.totalorder %s26, 1
      %p333 = por %p331, %p332
      %p334 = scmp.ne.s32.totalorder %s326, %s329
      %p335 = scmp.eq.s32.totalorder %s26, 0
      %p336 = por %p334, %p335
      %p337 = scmp.ne.s32.totalorder %s326, %s329
      %p338 = scmp.eq.s32.totalorder %s31, 1
      %p339 = por %p337, %p338
      %p340 = scmp.ne.s32.totalorder %s329, %s330
      %p341 = scmp.eq.s32.totalorder %s31, 0
      %p342 = por %p340, %p341
      %p343 = scmp.ne.s32.totalorder %s329, %s330
      %p344 = scmp.eq.s32.totalorder %s32, 1
      %p345 = por %p343, %p344
      %p347 = scmp.ne.s32.totalorder %s330, %s346
      %p348 = scmp.eq.s32.totalorder %s32, 0
      %p349 = por %p347, %p348
      %s350 = ssub.s32 %s33, %s45
      %s351 = ssub.s32 %s34, %s41
      %s352 = sor.u32 %s350, %s351
      %p353 = scmp.eq.s32.totalorder %s352, 0
      %s355 = sadd.s32 %s354, 1
      %s356 = scalar_select %p353, %s354, %s355
      %p359 = pneg %p353
      %p360 = scmp.eq.s32.totalorder %s26, 1
      %p361 = por %p359, %p360
      %p362 = scmp.ne.s32.totalorder %s354, %s357
      %p363 = scmp.eq.s32.totalorder %s26, 0
      %p364 = por %p362, %p363
      %p365 = scmp.ne.s32.totalorder %s354, %s357
      %p366 = scmp.eq.s32.totalorder %s31, 1
      %p367 = por %p365, %p366
      %p368 = scmp.ne.s32.totalorder %s357, %s358
      %p369 = scmp.eq.s32.totalorder %s31, 0
      %p370 = por %p368, %p369
      %p371 = scmp.ne.s32.totalorder %s357, %s358
      %p372 = scmp.eq.s32.totalorder %s32, 1
      %p373 = por %p371, %p372
      %p375 = scmp.ne.s32.totalorder %s358, %s374
      %p376 = scmp.eq.s32.totalorder %s32, 0
      %p377 = por %p375, %p376
      %p378 = scmp.le.s32.totalorder 1, %s26
      %p379 = scmp.lt.s32.totalorder %s26, 3
      %p380 = pnand %p378, %p379
      %p381 = pneg %p380
      // Predicated region
      $region9: #{tpu_custom_call.1} parent=5 // pred_check
        _
      $region10: #{tpu_custom_call.1} parent=5 // pred_check_branch
        %383 = sbr.rel (%p380) target = $region12
      $region11: #{tpu_custom_call.1} parent=5 // pred_region
        %s384 = ssub.s32 %s26, 1
        // Predicated region
        $region13: #{tpu_custom_call.1} parent=11 // pred_check
          %p385 = pneg %p167
        $region14: #{tpu_custom_call.1} parent=11 // pred_check_branch
          %387 = sbr.rel (%p385) target = $region16
        $region15: #{tpu_custom_call.1} parent=11 // pred_region
          _
        $region16: #{tpu_custom_call.1} parent=11 // pred_fallthru
          _
        // Predicated region
        $region17: #{tpu_custom_call.1} parent=11 // pred_check
          %p388 = pneg %p188
        $region18: #{tpu_custom_call.1} parent=11 // pred_check_branch
          %390 = sbr.rel (%p388) target = $region20
        $region19: #{tpu_custom_call.1} parent=11 // pred_region
          _
        $region20: #{tpu_custom_call.1} parent=11 // pred_fallthru
          _
        // Predicated region
        $region21: #{tpu_custom_call.1} parent=11 // pred_check
          %p391 = pneg %p209
        $region22: #{tpu_custom_call.1} parent=11 // pred_check_branch
          %393 = sbr.rel (%p391) target = $region24
        $region23: #{tpu_custom_call.1} parent=11 // pred_region
          _
        $region24: #{tpu_custom_call.1} parent=11 // pred_fallthru
          _
        // Predicated region
        $region25: #{tpu_custom_call.1} parent=11 // pred_check
          %p394 = pneg %p230
        $region26: #{tpu_custom_call.1} parent=11 // pred_check_branch
          %396 = sbr.rel (%p394) target = $region28
        $region27: #{tpu_custom_call.1} parent=11 // pred_region
          _
        $region28: #{tpu_custom_call.1} parent=11 // pred_fallthru
          _
        // Predicated region
        $region29: #{tpu_custom_call.1} parent=11 // pred_check
          %p397 = pneg %p251
        $region30: #{tpu_custom_call.1} parent=11 // pred_check_branch
          %399 = sbr.rel (%p397) target = $region32
        $region31: #{tpu_custom_call.1} parent=11 // pred_region
          _
        $region32: #{tpu_custom_call.1} parent=11 // pred_fallthru
          _
        // Predicated region
        $region33: #{tpu_custom_call.1} parent=11 // pred_check
          %p400 = pneg %p272
        $region34: #{tpu_custom_call.1} parent=11 // pred_check_branch
          %402 = sbr.rel (%p400) target = $region36
        $region35: #{tpu_custom_call.1} parent=11 // pred_region
          _
        $region36: #{tpu_custom_call.1} parent=11 // pred_fallthru
          _
        // Predicated region
        $region37: #{tpu_custom_call.1} parent=11 // pred_check
          %p403 = pneg %p293
        $region38: #{tpu_custom_call.1} parent=11 // pred_check_branch
          %405 = sbr.rel (%p403) target = $region40
        $region39: #{tpu_custom_call.1} parent=11 // pred_region
          _
        $region40: #{tpu_custom_call.1} parent=11 // pred_fallthru
          _
        // Predicated region
        $region41: #{tpu_custom_call.1} parent=11 // pred_check
          %p406 = pneg %p314
        $region42: #{tpu_custom_call.1} parent=11 // pred_check_branch
          %408 = sbr.rel (%p406) target = $region44
        $region43: #{tpu_custom_call.1} parent=11 // pred_region
          _
        $region44: #{tpu_custom_call.1} parent=11 // pred_fallthru
          _
      $region12: #{tpu_custom_call.1} parent=5 // pred_fallthru
        _
      %p409 = scmp.lt.s32.totalorder %s26, 2
      // Predicated region
      $region45: #{tpu_custom_call.1} parent=5 // pred_check
        %p410 = pneg %p409
      $region46: #{tpu_custom_call.1} parent=5 // pred_check_branch
        %412 = sbr.rel (%p410) target = $region48
      $region47: #{tpu_custom_call.1} parent=5 // pred_region
        // Predicated region
        $region49: #{tpu_custom_call.1} parent=47 // pred_check
          %p413 = pneg %p60
        $region50: #{tpu_custom_call.1} parent=47 // pred_check_branch
          %415 = sbr.rel (%p413) target = $region52
        $region51: #{tpu_custom_call.1} parent=47 // pred_region
          %p416 = scmp.lt.s32.totalorder %s33, 1
          %s417 = scalar_select %p416, %s33, 1
          %p418 = scmp.lt.s32.totalorder %s34, 0
          %s419 = scalar_select %p418, %s34, 0
          %s420 = sadd.s32 %s419, %s417
          %s421 = smul.addr %s420, 8
          %s422 = scalar_lea.vmem %s0, %s421
        $region52: #{tpu_custom_call.1} parent=47 // pred_fallthru
          _
        // Predicated region
        $region53: #{tpu_custom_call.1} parent=47 // pred_check
          %p423 = pneg %p88
        $region54: #{tpu_custom_call.1} parent=47 // pred_check_branch
          %425 = sbr.rel (%p423) target = $region56
        $region55: #{tpu_custom_call.1} parent=47 // pred_region
          %p426 = scmp.lt.s32.totalorder %s33, 1
          %s427 = scalar_select %p426, %s33, 1
          %p428 = scmp.lt.s32.totalorder %s34, 0
          %s429 = scalar_select %p428, %s34, 0
          %s430 = sadd.s32 %s429, %s427
          %s431 = smul.addr %s430, 8
          %s432 = scalar_lea.vmem %s1, %s431
        $region56: #{tpu_custom_call.1} parent=47 // pred_fallthru
          _
        // Predicated region
        $region57: #{tpu_custom_call.1} parent=47 // pred_check
          %p433 = pneg %p114
        $region58: #{tpu_custom_call.1} parent=47 // pred_check_branch
          %435 = sbr.rel (%p433) target = $region60
        $region59: #{tpu_custom_call.1} parent=47 // pred_region
          %p436 = scmp.lt.s32.totalorder %s33, 1
          %s437 = scalar_select %p436, %s33, 1
          %s438 = smul.addr %s437, 16
          %s439 = smul.addr %s438, 8
          %s440 = scalar_lea.vmem %s2, %s439
        $region60: #{tpu_custom_call.1} parent=47 // pred_fallthru
          _
        // Predicated region
        $region61: #{tpu_custom_call.1} parent=47 // pred_check
          %p441 = pneg %p140
        $region62: #{tpu_custom_call.1} parent=47 // pred_check_branch
          %443 = sbr.rel (%p441) target = $region64
        $region63: #{tpu_custom_call.1} parent=47 // pred_region
          %p444 = scmp.lt.s32.totalorder %s33, 1
          %s445 = scalar_select %p444, %s33, 1
          %s446 = smul.addr %s445, 16
          %s447 = smul.addr %s446, 8
          %s448 = scalar_lea.vmem %s3, %s447
        $region64: #{tpu_custom_call.1} parent=47 // pred_fallthru
          _
      $region48: #{tpu_custom_call.1} parent=5 // pred_fallthru
        _
      %p449 = scmp.le.s32.totalorder 1, %s26
      %p450 = scmp.lt.s32.totalorder %s26, 3
      %p451 = pnand %p449, %p450
      %p452 = pneg %p451
      // Predicated region
      $region65: #{tpu_custom_call.1} parent=5 // pred_check
        _
      $region66: #{tpu_custom_call.1} parent=5 // pred_check_branch
        %454 = sbr.rel (%p451) target = $region68
      $region67: #{tpu_custom_call.1} parent=5 // pred_region
        %s455 = ssub.s32 %s26, 1
        %p456 = scmp.lt.s32.totalorder %s35, 1
        %s457 = scalar_select %p456, %s35, 1
        %p458 = scmp.lt.s32.totalorder %s36, 0
        %s459 = scalar_select %p458, %s36, 0
        %s460 = sadd.s32 %s459, %s457
        %s461 = smul.addr %s460, 8
        %s462 = scalar_lea.vmem %s0, %s461
        %p463 = pneg %p66
        %p464 = pneg %p63
        %p465 = scmp.lt.s32.totalorder %s35, 1
        %s466 = scalar_select %p465, %s35, 1
        %p467 = scmp.lt.s32.totalorder %s36, 0
        %s468 = scalar_select %p467, %s36, 0
        %s469 = sadd.s32 %s468, %s466
        %s470 = smul.addr %s469, 8
        %s471 = scalar_lea.vmem %s1, %s470
        %p472 = pneg %p94
        %p473 = pneg %p91
        %p474 = scmp.lt.s32.totalorder %s35, 1
        %s475 = scalar_select %p474, %s35, 1
        %s476 = smul.addr %s475, 16
        %s477 = smul.addr %s476, 8
        %s478 = scalar_lea.vmem %s2, %s477
        %p479 = pneg %p120
        %p480 = pneg %p117
        %p481 = scmp.lt.s32.totalorder %s35, 1
        %s482 = scalar_select %p481, %s35, 1
        %s483 = smul.addr %s482, 16
        %s484 = smul.addr %s483, 8
        %s485 = scalar_lea.vmem %s3, %s484
        %p486 = pneg %p146
        %p487 = pneg %p143
        %p488 = pneg %p167
        %p489 = pneg %p164
        %p490 = pneg %p188
        %p491 = pneg %p185
        %p492 = pneg %p209
        %p493 = pneg %p206
        %p494 = pneg %p230
        %p495 = pneg %p227
        %p496 = pneg %p251
        %p497 = pneg %p248
        %p498 = pneg %p272
        %p499 = pneg %p269
        %p500 = pneg %p293
        %p501 = pneg %p290
        %p502 = pneg %p314
        %p503 = pneg %p311
        %p504 = pneg %p342
        %p505 = pneg %p339
        %s506 = sand.u32 %s329, 1
        %s507 = scalar_lea.sflag [#allocation3], %s506
        %s508 = sand.u32 %s329, 1
        %s509 = smul.addr %s508, 8
        %s510 = scalar_lea.vmem [#allocation2], %s509
        %p511 = pneg %p370
        %p512 = pneg %p367
        %s513 = sand.u32 %s357, 1
        %s514 = scalar_lea.sflag [#allocation5], %s513
        %s515 = sand.u32 %s357, 1
        %s516 = smul.addr %s515, 8
        %s517 = scalar_lea.vmem [#allocation4], %s516
        %p518 = scmp.lt.s32.totalorder %s35, 1
        %s519 = scalar_select %p518, %s35, 1
        %p520 = scmp.lt.s32.totalorder %s36, 0
        %s521 = scalar_select %p520, %s36, 0
        %s522 = sadd.s32 %s521, %s519
        %s523 = smul.addr %s522, 8
        %s524 = scalar_lea.vmem %s0, %s523
        %p525 = scmp.lt.s32.totalorder %s35, 1
        %s526 = scalar_select %p525, %s35, 1
        %p527 = scmp.lt.s32.totalorder %s36, 0
        %s528 = scalar_select %p527, %s36, 0
        %s529 = sadd.s32 %s528, %s526
        %s530 = smul.addr %s529, 8
        %s531 = scalar_lea.vmem %s1, %s530
        %p532 = scmp.lt.s32.totalorder %s35, 1
        %s533 = scalar_select %p532, %s35, 1
        %s534 = smul.addr %s533, 16
        %s535 = smul.addr %s534, 8
        %s536 = scalar_lea.vmem %s2, %s535
        %p537 = scmp.lt.s32.totalorder %s35, 1
        %s538 = scalar_select %p537, %s35, 1
        %s539 = smul.addr %s538, 16
        %s540 = smul.addr %s539, 8
        %s541 = scalar_lea.vmem %s3, %s540
        %v543 = vld [vmem:[%s531] sm:$0xff]
        %v544 = vld [vmem:[%s536] sm:$0xff]
        %v545 = vld [vmem:[%s536 + $0x8] sm:$0xff]
        %v546 = vld [vmem:[%s536 + $0x10] sm:$0xff]
        %v547 = vld [vmem:[%s536 + $0x18] sm:$0xff]
        %v548 = vld [vmem:[%s536 + $0x20] sm:$0xff]
        %v549 = vld [vmem:[%s536 + $0x28] sm:$0xff]
        %v550 = vld [vmem:[%s536 + $0x30] sm:$0xff]
        %v551 = vld [vmem:[%s536 + $0x38] sm:$0xff]
        %v552 = vld [vmem:[%s536 + $0x40] sm:$0xff]
        %v553 = vld [vmem:[%s536 + $0x48] sm:$0xff]
        %v554 = vld [vmem:[%s536 + $0x50] sm:$0xff]
        %v555 = vld [vmem:[%s536 + $0x58] sm:$0xff]
        %v556 = vld [vmem:[%s536 + $0x60] sm:$0xff]
        %v557 = vld [vmem:[%s536 + $0x68] sm:$0xff]
        %v558 = vld [vmem:[%s536 + $0x70] sm:$0xff]
        %v559 = vld [vmem:[%s536 + $0x78] sm:$0xff]
        %v560 = vld [vmem:[%s541] sm:$0xff]
        %v561 = vld [vmem:[%s541 + $0x8] sm:$0xff]
        %v562 = vld [vmem:[%s541 + $0x10] sm:$0xff]
        %v563 = vld [vmem:[%s541 + $0x18] sm:$0xff]
        %v564 = vld [vmem:[%s541 + $0x20] sm:$0xff]
        %v565 = vld [vmem:[%s541 + $0x28] sm:$0xff]
        %v566 = vld [vmem:[%s541 + $0x30] sm:$0xff]
        %v567 = vld [vmem:[%s541 + $0x38] sm:$0xff]
        %v568 = vld [vmem:[%s541 + $0x40] sm:$0xff]
        %v569 = vld [vmem:[%s541 + $0x48] sm:$0xff]
        %v570 = vld [vmem:[%s541 + $0x50] sm:$0xff]
        %v571 = vld [vmem:[%s541 + $0x58] sm:$0xff]
        %v572 = vld [vmem:[%s541 + $0x60] sm:$0xff]
        %v573 = vld [vmem:[%s541 + $0x68] sm:$0xff]
        %v574 = vld [vmem:[%s541 + $0x70] sm:$0xff]
        %v575 = vld [vmem:[%s541 + $0x78] sm:$0xff]
        %v576 = vld [vmem:[%s524] sm:$0xff]
        %v577 = vpack.c.bf16 %v543, %v543
        %v578 = vld [vmem:[%s4] sm:$0xf]
        %v579 = vld [vmem:[%s4 + $0x4] sm:$0xf]
        %v580 = vld [vmem:[%s4 + $0x8] sm:$0xf]
        %v581 = vld [vmem:[%s4 + $0xc] sm:$0xf]
        %v582 = vld [vmem:[%s5] sm:$0x1]
        %v584 = vperm.slane %v582, 0
        %v590 = vunpack.c.l.b16 %v578
        %v591 = vunpack.c.l.b16 %v579
        %v592 = vunpack.c.l.b16 %v580
        %v593 = vunpack.c.l.b16 %v581
        %v594 = vpack.c.b16 %v591, %v590
        %v595 = vpack.c.b16 %v593, %v592
        %vm598 = vcmask 261120
        %v600 = vsel %vm598, %v577, 0
        %602 = vmatpush.bf16.msra.mxu0 0
        %603 = vmatpush.bf16.msra.mxu0 0
        %604 = vmatpush.bf16.msra.mxu0 0
        %605 = vmatpush.bf16.msra.mxu0 0
        %606 = vmatpush.bf16.msra.mxu0 0
        %607 = vmatpush.bf16.msra.mxu0 0
        %608 = vmatpush.bf16.msra.mxu0 %v595
        %609 = vmatpush.bf16.msra.mxu0 %v594
        %610 = vmatmul.bf16.gmra.mxu0 %v600
        %v611 = vpop.f32.mrf.mxu0
        %v612 = vadd.f32 %v584, %v611
        %v613 = vpop.f32.mrf.mxu0
        %614 = vdwg.mxu0
        %v615 = vmul.f32 %v612, 0.35355338
        %v616 = vpack.c.bf16 %v545, %v544
        %v617 = vpack.c.bf16 %v547, %v546
        %v618 = vpack.c.bf16 %v549, %v548
        %v619 = vpack.c.bf16 %v551, %v550
        %v620 = vpack.c.bf16 %v553, %v552
        %v621 = vpack.c.bf16 %v555, %v554
        %v622 = vpack.c.bf16 %v557, %v556
        %v623 = vpack.c.bf16 %v559, %v558
        %v624 = vld [vmem:[%s6] sm:$0xf]
        %v625 = vld [vmem:[%s6 + $0x4] sm:$0xf]
        %v626 = vld [vmem:[%s6 + $0x8] sm:$0xf]
        %v627 = vld [vmem:[%s6 + $0xc] sm:$0xf]
        %v628 = vld [vmem:[%s7] sm:$0x1]
        %v630 = vperm.slane %v628, 0
        %v636 = vunpack.c.l.b16 %v624
        %v637 = vunpack.c.l.b16 %v625
        %v638 = vunpack.c.l.b16 %v626
        %v639 = vunpack.c.l.b16 %v627
        %v640 = vpack.c.b16 %v637, %v636
        %v641 = vpack.c.b16 %v639, %v638
        %v645 = vsel %vm598, %v616, 0
        %v648 = vsel %vm598, %v617, 0
        %v651 = vsel %vm598, %v618, 0
        %v654 = vsel %vm598, %v619, 0
        %v657 = vsel %vm598, %v620, 0
        %v660 = vsel %vm598, %v621, 0
        %v663 = vsel %vm598, %v622, 0
        %v666 = vsel %vm598, %v623, 0
        %668 = vmatpush.bf16.msra.mxu0 0
        %669 = vmatpush.bf16.msra.mxu0 0
        %670 = vmatpush.bf16.msra.mxu0 0
        %671 = vmatpush.bf16.msra.mxu0 0
        %672 = vmatpush.bf16.msra.mxu0 0
        %673 = vmatpush.bf16.msra.mxu0 0
        %674 = vmatpush.bf16.msra.mxu0 %v641
        %675 = vmatpush.bf16.msra.mxu0 %v640
        %676 = vmatmul.bf16.gmra.mxu0 %v645
        %v677 = vpop.f32.mrf.mxu0
        %v678 = vadd.f32 %v630, %v677
        %v679 = vpop.f32.mrf.mxu0
        %v680 = vadd.f32 %v630, %v679
        %681 = vmatmul.bf16.gmra.mxu0 %v648
        %v682 = vpop.f32.mrf.mxu0
        %v683 = vadd.f32 %v630, %v682
        %v684 = vpop.f32.mrf.mxu0
        %v685 = vadd.f32 %v630, %v684
        %686 = vmatmul.bf16.gmra.mxu0 %v651
        %v687 = vpop.f32.mrf.mxu0
        %v688 = vadd.f32 %v630, %v687
        %v689 = vpop.f32.mrf.mxu0
        %v690 = vadd.f32 %v630, %v689
        %691 = vmatmul.bf16.gmra.mxu0 %v654
        %v692 = vpop.f32.mrf.mxu0
        %v693 = vadd.f32 %v630, %v692
        %v694 = vpop.f32.mrf.mxu0
        %v695 = vadd.f32 %v630, %v694
        %696 = vmatmul.bf16.gmra.mxu0 %v657
        %v697 = vpop.f32.mrf.mxu0
        %v698 = vadd.f32 %v630, %v697
        %v699 = vpop.f32.mrf.mxu0
        %v700 = vadd.f32 %v630, %v699
        %701 = vmatmul.bf16.gmra.mxu0 %v660
        %v702 = vpop.f32.mrf.mxu0
        %v703 = vadd.f32 %v630, %v702
        %v704 = vpop.f32.mrf.mxu0
        %v705 = vadd.f32 %v630, %v704
        %706 = vmatmul.bf16.gmra.mxu0 %v663
        %v707 = vpop.f32.mrf.mxu0
        %v708 = vadd.f32 %v630, %v707
        %v709 = vpop.f32.mrf.mxu0
        %v710 = vadd.f32 %v630, %v709
        %711 = vmatmul.bf16.gmra.mxu0 %v666
        %v712 = vpop.f32.mrf.mxu0
        %v713 = vadd.f32 %v630, %v712
        %v714 = vpop.f32.mrf.mxu0
        %v715 = vadd.f32 %v630, %v714
        %716 = vdwg.mxu0
        %v717 = vpack.c.bf16 %v561, %v560
        %v718 = vpack.c.bf16 %v563, %v562
        %v719 = vpack.c.bf16 %v565, %v564
        %v720 = vpack.c.bf16 %v567, %v566
        %v721 = vpack.c.bf16 %v569, %v568
        %v722 = vpack.c.bf16 %v571, %v570
        %v723 = vpack.c.bf16 %v573, %v572
        %v724 = vpack.c.bf16 %v575, %v574
        %v725 = vld [vmem:[%s8] sm:$0xf]
        %v726 = vld [vmem:[%s8 + $0x4] sm:$0xf]
        %v727 = vld [vmem:[%s8 + $0x8] sm:$0xf]
        %v728 = vld [vmem:[%s8 + $0xc] sm:$0xf]
        %v729 = vld [vmem:[%s9] sm:$0x1]
        %v731 = vperm.slane %v729, 0
        %v737 = vunpack.c.l.b16 %v725
        %v738 = vunpack.c.l.b16 %v726
        %v739 = vunpack.c.l.b16 %v727
        %v740 = vunpack.c.l.b16 %v728
        %v741 = vpack.c.b16 %v738, %v737
        %v742 = vpack.c.b16 %v740, %v739
        %v746 = vsel %vm598, %v717, 0
        %v749 = vsel %vm598, %v718, 0
        %v752 = vsel %vm598, %v719, 0
        %v755 = vsel %vm598, %v720, 0
        %v758 = vsel %vm598, %v721, 0
        %v761 = vsel %vm598, %v722, 0
        %v764 = vsel %vm598, %v723, 0
        %v767 = vsel %vm598, %v724, 0
        %769 = vmatpush.bf16.msra.mxu0 0
        %770 = vmatpush.bf16.msra.mxu0 0
        %771 = vmatpush.bf16.msra.mxu0 0
        %772 = vmatpush.bf16.msra.mxu0 0
        %773 = vmatpush.bf16.msra.mxu0 0
        %774 = vmatpush.bf16.msra.mxu0 0
        %775 = vmatpush.bf16.msra.mxu0 %v742
        %776 = vmatpush.bf16.msra.mxu0 %v741
        %777 = vmatmul.bf16.gmra.mxu0 %v746
        %v778 = vpop.f32.mrf.mxu0
        %v779 = vadd.f32 %v731, %v778
        %v780 = vpop.f32.mrf.mxu0
        %v781 = vadd.f32 %v731, %v780
        %782 = vmatmul.bf16.gmra.mxu0 %v749
        %v783 = vpop.f32.mrf.mxu0
        %v784 = vadd.f32 %v731, %v783
        %v785 = vpop.f32.mrf.mxu0
        %v786 = vadd.f32 %v731, %v785
        %787 = vmatmul.bf16.gmra.mxu0 %v752
        %v788 = vpop.f32.mrf.mxu0
        %v789 = vadd.f32 %v731, %v788
        %v790 = vpop.f32.mrf.mxu0
        %v791 = vadd.f32 %v731, %v790
        %792 = vmatmul.bf16.gmra.mxu0 %v755
        %v793 = vpop.f32.mrf.mxu0
        %v794 = vadd.f32 %v731, %v793
        %v795 = vpop.f32.mrf.mxu0
        %v796 = vadd.f32 %v731, %v795
        %797 = vmatmul.bf16.gmra.mxu0 %v758
        %v798 = vpop.f32.mrf.mxu0
        %v799 = vadd.f32 %v731, %v798
        %v800 = vpop.f32.mrf.mxu0
        %v801 = vadd.f32 %v731, %v800
        %802 = vmatmul.bf16.gmra.mxu0 %v761
        %v803 = vpop.f32.mrf.mxu0
        %v804 = vadd.f32 %v731, %v803
        %v805 = vpop.f32.mrf.mxu0
        %v806 = vadd.f32 %v731, %v805
        %807 = vmatmul.bf16.gmra.mxu0 %v764
        %v808 = vpop.f32.mrf.mxu0
        %v809 = vadd.f32 %v731, %v808
        %v810 = vpop.f32.mrf.mxu0
        %v811 = vadd.f32 %v731, %v810
        %812 = vmatmul.bf16.gmra.mxu0 %v767
        %v813 = vpop.f32.mrf.mxu0
        %v814 = vadd.f32 %v731, %v813
        %v815 = vpop.f32.mrf.mxu0
        %v816 = vadd.f32 %v731, %v815
        %817 = vdwg.mxu0
        %v818 = vpack.c.bf16 %v615, %v615
        %v819 = vpack.c.bf16 %v680, %v678
        %v820 = vpack.c.bf16 %v685, %v683
        %v821 = vpack.c.bf16 %v690, %v688
        %v822 = vpack.c.bf16 %v695, %v693
        %v823 = vpack.c.bf16 %v700, %v698
        %v824 = vpack.c.bf16 %v705, %v703
        %v825 = vpack.c.bf16 %v710, %v708
        %v826 = vpack.c.bf16 %v715, %v713
        %v827 = vpack.c.bf16 %v781, %v779
        %v828 = vpack.c.bf16 %v786, %v784
        %v829 = vpack.c.bf16 %v791, %v789
        %v830 = vpack.c.bf16 %v796, %v794
        %v831 = vpack.c.bf16 %v801, %v799
        %v832 = vpack.c.bf16 %v806, %v804
        %v833 = vpack.c.bf16 %v811, %v809
        %v834 = vpack.c.bf16 %v816, %v814
        %vm835 = vcmask 64512
        %v837 = vsel %vm835, %v818, 0
        %v840 = vsel %vm835, %v819, 0
        %v843 = vsel %vm835, %v820, 0
        %v846 = vsel %vm835, %v821, 0
        %v849 = vsel %vm835, %v822, 0
        %v852 = vsel %vm835, %v823, 0
        %v855 = vsel %vm835, %v824, 0
        %v858 = vsel %vm835, %v825, 0
        %v861 = vsel %vm835, %v826, 0
        %863 = vmatpush.bf16.xpose.msra.mxu0 %v861
        %864 = vmatpush.bf16.xpose.msra.mxu0 %v858
        %865 = vmatpush.bf16.xpose.msra.mxu0 %v855
        %866 = vmatpush.bf16.xpose.msra.mxu0 %v852
        %867 = vmatpush.bf16.xpose.msra.mxu0 %v849
        %868 = vmatpush.bf16.xpose.msra.mxu0 %v846
        %869 = vmatpush.bf16.xpose.msra.mxu0 %v843
        %870 = vmatpush.bf16.xpose.msra.mxu0 %v840
        %871 = vmatmul.bf16.gmra.mxu0 %v837
        %v872 = vpop.f32.mrf.mxu0
        %v873 = vadd.f32 0.0, %v872
        %v874 = vpop.f32.mrf.mxu0
        %875 = vdwg.mxu0
        %vm876 = vcmp.gt.f32.partialorder %v576, 0.5
        %v877 = vsel %vm876, -1e+18, %v873
        %878 = vmax.xlane.f32.xlu0 %v877
        %v879 = vpop.xlane.xlu0 %878
        %v880 = vsub.f32 %v877, %v879
        %v881 = vmul.f32 %v880, 1.442695
        %v882 = vpow.pop %v881
        %883 = vadd.xlane.f32.xlu0 %v882
        %v884 = vpop.xlane.xlu0 %883
        %v885 = vrcp.pop %v884
        %v886 = vmul.f32 %v882, %v885
        %v887 = vpack.c.bf16 %v886, %v886
        %888 = vmatpush.bf16.msra.mxu0 %v834
        %889 = vmatpush.bf16.msra.mxu0 %v833
        %890 = vmatpush.bf16.msra.mxu0 %v832
        %891 = vmatpush.bf16.msra.mxu0 %v831
        %892 = vmatpush.bf16.msra.mxu0 %v830
        %893 = vmatpush.bf16.msra.mxu0 %v829
        %894 = vmatpush.bf16.msra.mxu0 %v828
        %895 = vmatpush.bf16.msra.mxu0 %v827
        %896 = vmatmul.bf16.gmra.mxu0 %v887
        %v897 = vpop.f32.mrf.mxu0
        %v898 = vadd.f32 0.0, %v897
        %v899 = vpop.f32.mrf.mxu0
        %900 = vdwg.mxu0
        %902 = vrot.lane.b32.xlu0 %v818, 120
        %v903 = vpop.permute.xlu0 %902
        %912 = vrot.lane.b32.xlu0 %v819, 120
        %v913 = vpop.permute.xlu0 %912
        %914 = vrot.lane.b32.xlu0 %v820, 120
        %v915 = vpop.permute.xlu0 %914
        %916 = vrot.lane.b32.xlu0 %v821, 120
        %v917 = vpop.permute.xlu0 %916
        %918 = vrot.lane.b32.xlu0 %v822, 120
        %v919 = vpop.permute.xlu0 %918
        %920 = vrot.lane.b32.xlu0 %v823, 120
        %v921 = vpop.permute.xlu0 %920
        %922 = vrot.lane.b32.xlu0 %v824, 120
        %v923 = vpop.permute.xlu0 %922
        %924 = vrot.lane.b32.xlu0 %v825, 120
        %v925 = vpop.permute.xlu0 %924
        %926 = vrot.lane.b32.xlu0 %v826, 120
        %v927 = vpop.permute.xlu0 %926
        %v929 = vsel %vm835, %v903, 0
        %v932 = vsel %vm835, %v913, 0
        %v935 = vsel %vm835, %v915, 0
        %v938 = vsel %vm835, %v917, 0
        %v941 = vsel %vm835, %v919, 0
        %v944 = vsel %vm835, %v921, 0
        %v947 = vsel %vm835, %v923, 0
        %v950 = vsel %vm835, %v925, 0
        %v953 = vsel %vm835, %v927, 0
        %955 = vmatpush.bf16.xpose.msra.mxu0 %v953
        %956 = vmatpush.bf16.xpose.msra.mxu0 %v950
        %957 = vmatpush.bf16.xpose.msra.mxu0 %v947
        %958 = vmatpush.bf16.xpose.msra.mxu0 %v944
        %959 = vmatpush.bf16.xpose.msra.mxu0 %v941
        %960 = vmatpush.bf16.xpose.msra.mxu0 %v938
        %961 = vmatpush.bf16.xpose.msra.mxu0 %v935
        %962 = vmatpush.bf16.xpose.msra.mxu0 %v932
        %963 = vmatmul.bf16.gmra.mxu0 %v929
        %v964 = vpop.f32.mrf.mxu0
        %v965 = vadd.f32 0.0, %v964
        %v966 = vpop.f32.mrf.mxu0
        %967 = vdwg.mxu0
        %v968 = vsel %vm876, -1e+18, %v965
        %969 = vmax.xlane.f32.xlu0 %v968
        %v970 = vpop.xlane.xlu0 %969
        %v971 = vsub.f32 %v968, %v970
        %v972 = vmul.f32 %v971, 1.442695
        %v973 = vpow.pop %v972
        %974 = vadd.xlane.f32.xlu0 %v973
        %v975 = vpop.xlane.xlu0 %974
        %v976 = vrcp.pop %v975
        %v977 = vmul.f32 %v973, %v976
        %v978 = vpack.c.bf16 %v977, %v977
        %987 = vrot.lane.b32.xlu0 %v827, 120
        %v988 = vpop.permute.xlu0 %987
        %989 = vrot.lane.b32.xlu0 %v828, 120
        %v990 = vpop.permute.xlu0 %989
        %991 = vrot.lane.b32.xlu0 %v829, 120
        %v992 = vpop.permute.xlu0 %991
        %993 = vrot.lane.b32.xlu0 %v830, 120
        %v994 = vpop.permute.xlu0 %993
        %995 = vrot.lane.b32.xlu0 %v831, 120
        %v996 = vpop.permute.xlu0 %995
        %997 = vrot.lane.b32.xlu0 %v832, 120
        %v998 = vpop.permute.xlu0 %997
        %999 = vrot.lane.b32.xlu0 %v833, 120
        %v1000 = vpop.permute.xlu0 %999
        %1001 = vrot.lane.b32.xlu0 %v834, 120
        %v1002 = vpop.permute.xlu0 %1001
        %1011 = vmatpush.bf16.msra.mxu0 %v1002
        %1012 = vmatpush.bf16.msra.mxu0 %v1000
        %1013 = vmatpush.bf16.msra.mxu0 %v998
        %1014 = vmatpush.bf16.msra.mxu0 %v996
        %1015 = vmatpush.bf16.msra.mxu0 %v994
        %1016 = vmatpush.bf16.msra.mxu0 %v992
        %1017 = vmatpush.bf16.msra.mxu0 %v990
        %1018 = vmatpush.bf16.msra.mxu0 %v988
        %1019 = vmatmul.bf16.gmra.mxu0 %v978
        %v1020 = vpop.f32.mrf.mxu0
        %v1021 = vadd.f32 0.0, %v1020
        %v1022 = vpop.f32.mrf.mxu0
        %1023 = vdwg.mxu0
        %1024 = vrot.lane.b32.xlu0 %v818, 112
        %v1025 = vpop.permute.xlu0 %1024
        %1026 = vrot.lane.b32.xlu0 %v819, 112
        %v1027 = vpop.permute.xlu0 %1026
        %1028 = vrot.lane.b32.xlu0 %v820, 112
        %v1029 = vpop.permute.xlu0 %1028
        %1030 = vrot.lane.b32.xlu0 %v821, 112
        %v1031 = vpop.permute.xlu0 %1030
        %1032 = vrot.lane.b32.xlu0 %v822, 112
        %v1033 = vpop.permute.xlu0 %1032
        %1034 = vrot.lane.b32.xlu0 %v823, 112
        %v1035 = vpop.permute.xlu0 %1034
        %1036 = vrot.lane.b32.xlu0 %v824, 112
        %v1037 = vpop.permute.xlu0 %1036
        %1038 = vrot.lane.b32.xlu0 %v825, 112
        %v1039 = vpop.permute.xlu0 %1038
        %1040 = vrot.lane.b32.xlu0 %v826, 112
        %v1041 = vpop.permute.xlu0 %1040
        %v1043 = vsel %vm835, %v1025, 0
        %v1046 = vsel %vm835, %v1027, 0
        %v1049 = vsel %vm835, %v1029, 0
        %v1052 = vsel %vm835, %v1031, 0
        %v1055 = vsel %vm835, %v1033, 0
        %v1058 = vsel %vm835, %v1035, 0
        %v1061 = vsel %vm835, %v1037, 0
        %v1064 = vsel %vm835, %v1039, 0
        %v1067 = vsel %vm835, %v1041, 0
        %1069 = vmatpush.bf16.xpose.msra.mxu0 %v1067
        %1070 = vmatpush.bf16.xpose.msra.mxu0 %v1064
        %1071 = vmatpush.bf16.xpose.msra.mxu0 %v1061
        %1072 = vmatpush.bf16.xpose.msra.mxu0 %v1058
        %1073 = vmatpush.bf16.xpose.msra.mxu0 %v1055
        %1074 = vmatpush.bf16.xpose.msra.mxu0 %v1052
        %1075 = vmatpush.bf16.xpose.msra.mxu0 %v1049
        %1076 = vmatpush.bf16.xpose.msra.mxu0 %v1046
        %1077 = vmatmul.bf16.gmra.mxu0 %v1043
        %v1078 = vpop.f32.mrf.mxu0
        %v1079 = vadd.f32 0.0, %v1078
        %v1080 = vpop.f32.mrf.mxu0
        %1081 = vdwg.mxu0
        %v1082 = vsel %vm876, -1e+18, %v1079
        %1083 = vmax.xlane.f32.xlu0 %v1082
        %v1084 = vpop.xlane.xlu0 %1083
        %v1085 = vsub.f32 %v1082, %v1084
        %v1086 = vmul.f32 %v1085, 1.442695
        %v1087 = vpow.pop %v1086
        %1088 = vadd.xlane.f32.xlu0 %v1087
        %v1089 = vpop.xlane.xlu0 %1088
        %v1090 = vrcp.pop %v1089
        %v1091 = vmul.f32 %v1087, %v1090
        %v1092 = vpack.c.bf16 %v1091, %v1091
        %1093 = vrot.lane.b32.xlu0 %v827, 112
        %v1094 = vpop.permute.xlu0 %1093
        %1095 = vrot.lane.b32.xlu0 %v828, 112
        %v1096 = vpop.permute.xlu0 %1095
        %1097 = vrot.lane.b32.xlu0 %v829, 112
        %v1098 = vpop.permute.xlu0 %1097
        %1099 = vrot.lane.b32.xlu0 %v830, 112
        %v1100 = vpop.permute.xlu0 %1099
        %1101 = vrot.lane.b32.xlu0 %v831, 112
        %v1102 = vpop.permute.xlu0 %1101
        %1103 = vrot.lane.b32.xlu0 %v832, 112
        %v1104 = vpop.permute.xlu0 %1103
        %1105 = vrot.lane.b32.xlu0 %v833, 112
        %v1106 = vpop.permute.xlu0 %1105
        %1107 = vrot.lane.b32.xlu0 %v834, 112
        %v1108 = vpop.permute.xlu0 %1107
        %1117 = vmatpush.bf16.msra.mxu0 %v1108
        %1118 = vmatpush.bf16.msra.mxu0 %v1106
        %1119 = vmatpush.bf16.msra.mxu0 %v1104
        %1120 = vmatpush.bf16.msra.mxu0 %v1102
        %1121 = vmatpush.bf16.msra.mxu0 %v1100
        %1122 = vmatpush.bf16.msra.mxu0 %v1098
        %1123 = vmatpush.bf16.msra.mxu0 %v1096
        %1124 = vmatpush.bf16.msra.mxu0 %v1094
        %1125 = vmatmul.bf16.gmra.mxu0 %v1092
        %v1126 = vpop.f32.mrf.mxu0
        %v1127 = vadd.f32 0.0, %v1126
        %v1128 = vpop.f32.mrf.mxu0
        %1129 = vdwg.mxu0
        %1130 = vrot.lane.b32.xlu0 %v818, 104
        %v1131 = vpop.permute.xlu0 %1130
        %1132 = vrot.lane.b32.xlu0 %v819, 104
        %v1133 = vpop.permute.xlu0 %1132
        %1134 = vrot.lane.b32.xlu0 %v820, 104
        %v1135 = vpop.permute.xlu0 %1134
        %1136 = vrot.lane.b32.xlu0 %v821, 104
        %v1137 = vpop.permute.xlu0 %1136
        %1138 = vrot.lane.b32.xlu0 %v822, 104
        %v1139 = vpop.permute.xlu0 %1138
        %1140 = vrot.lane.b32.xlu0 %v823, 104
        %v1141 = vpop.permute.xlu0 %1140
        %1142 = vrot.lane.b32.xlu0 %v824, 104
        %v1143 = vpop.permute.xlu0 %1142
        %1144 = vrot.lane.b32.xlu0 %v825, 104
        %v1145 = vpop.permute.xlu0 %1144
        %1146 = vrot.lane.b32.xlu0 %v826, 104
        %v1147 = vpop.permute.xlu0 %1146
        %v1149 = vsel %vm835, %v1131, 0
        %v1152 = vsel %vm835, %v1133, 0
        %v1155 = vsel %vm835, %v1135, 0
        %v1158 = vsel %vm835, %v1137, 0
        %v1161 = vsel %vm835, %v1139, 0
        %v1164 = vsel %vm835, %v1141, 0
        %v1167 = vsel %vm835, %v1143, 0
        %v1170 = vsel %vm835, %v1145, 0
        %v1173 = vsel %vm835, %v1147, 0
        %1175 = vmatpush.bf16.xpose.msra.mxu0 %v1173
        %1176 = vmatpush.bf16.xpose.msra.mxu0 %v1170
        %1177 = vmatpush.bf16.xpose.msra.mxu0 %v1167
        %1178 = vmatpush.bf16.xpose.msra.mxu0 %v1164
        %1179 = vmatpush.bf16.xpose.msra.mxu0 %v1161
        %1180 = vmatpush.bf16.xpose.msra.mxu0 %v1158
        %1181 = vmatpush.bf16.xpose.msra.mxu0 %v1155
        %1182 = vmatpush.bf16.xpose.msra.mxu0 %v1152
        %1183 = vmatmul.bf16.gmra.mxu0 %v1149
        %v1184 = vpop.f32.mrf.mxu0
        %v1185 = vadd.f32 0.0, %v1184
        %v1186 = vpop.f32.mrf.mxu0
        %1187 = vdwg.mxu0
        %v1188 = vsel %vm876, -1e+18, %v1185
        %1189 = vmax.xlane.f32.xlu0 %v1188
        %v1190 = vpop.xlane.xlu0 %1189
        %v1191 = vsub.f32 %v1188, %v1190
        %v1192 = vmul.f32 %v1191, 1.442695
        %v1193 = vpow.pop %v1192
        %1194 = vadd.xlane.f32.xlu0 %v1193
        %v1195 = vpop.xlane.xlu0 %1194
        %v1196 = vrcp.pop %v1195
        %v1197 = vmul.f32 %v1193, %v1196
        %v1198 = vpack.c.bf16 %v1197, %v1197
        %1199 = vrot.lane.b32.xlu0 %v827, 104
        %v1200 = vpop.permute.xlu0 %1199
        %1201 = vrot.lane.b32.xlu0 %v828, 104
        %v1202 = vpop.permute.xlu0 %1201
        %1203 = vrot.lane.b32.xlu0 %v829, 104
        %v1204 = vpop.permute.xlu0 %1203
        %1205 = vrot.lane.b32.xlu0 %v830, 104
        %v1206 = vpop.permute.xlu0 %1205
        %1207 = vrot.lane.b32.xlu0 %v831, 104
        %v1208 = vpop.permute.xlu0 %1207
        %1209 = vrot.lane.b32.xlu0 %v832, 104
        %v1210 = vpop.permute.xlu0 %1209
        %1211 = vrot.lane.b32.xlu0 %v833, 104
        %v1212 = vpop.permute.xlu0 %1211
        %1213 = vrot.lane.b32.xlu0 %v834, 104
        %v1214 = vpop.permute.xlu0 %1213
        %1223 = vmatpush.bf16.msra.mxu0 %v1214
        %1224 = vmatpush.bf16.msra.mxu0 %v1212
        %1225 = vmatpush.bf16.msra.mxu0 %v1210
        %1226 = vmatpush.bf16.msra.mxu0 %v1208
        %1227 = vmatpush.bf16.msra.mxu0 %v1206
        %1228 = vmatpush.bf16.msra.mxu0 %v1204
        %1229 = vmatpush.bf16.msra.mxu0 %v1202
        %1230 = vmatpush.bf16.msra.mxu0 %v1200
        %1231 = vmatmul.bf16.gmra.mxu0 %v1198
        %v1232 = vpop.f32.mrf.mxu0
        %v1233 = vadd.f32 0.0, %v1232
        %v1234 = vpop.f32.mrf.mxu0
        %1235 = vdwg.mxu0
        %1237 = vrot.lane.b32.xlu0 %v1021, 8
        %v1238 = vpop.permute.xlu0 %1237
        %1241 = vrot.lane.b32.xlu0 %v1127, 16
        %v1242 = vpop.permute.xlu0 %1241
        %1245 = vrot.lane.b32.xlu0 %v1233, 24
        %v1246 = vpop.permute.xlu0 %1245
        %v1248 = vsel %vm835, %v898, %v1238
        %vm1249 = vcmask 130048
        %v1250 = vsel %vm1249, %v1248, %v1242
        %vm1251 = vcmask 195584
        %v1252 = vsel %vm1251, %v1250, %v1246
        %v1253 = vpack.c.bf16 %v1252, %v1252
        %v1254 = vld [vmem:[%s10] sm:$0xf]
        %v1255 = vld [vmem:[%s10 + $0x4] sm:$0xf]
        %v1256 = vld [vmem:[%s10 + $0x8] sm:$0xf]
        %v1257 = vld [vmem:[%s10 + $0xc] sm:$0xf]
        %v1258 = vld [vmem:[%s11] sm:$0x1]
        %v1260 = vperm.slane %v1258, 0
        %v1266 = vunpack.c.l.b16 %v1254
        %v1267 = vunpack.c.l.b16 %v1255
        %v1268 = vunpack.c.l.b16 %v1256
        %v1269 = vunpack.c.l.b16 %v1257
        %v1270 = vpack.c.b16 %v1267, %v1266
        %v1271 = vpack.c.b16 %v1269, %v1268
        %v1275 = vsel %vm598, %v1253, 0
        %1277 = vmatpush.bf16.msra.mxu0 0
        %1278 = vmatpush.bf16.msra.mxu0 0
        %1279 = vmatpush.bf16.msra.mxu0 0
        %1280 = vmatpush.bf16.msra.mxu0 0
        %1281 = vmatpush.bf16.msra.mxu0 0
        %1282 = vmatpush.bf16.msra.mxu0 0
        %1283 = vmatpush.bf16.msra.mxu0 %v1271
        %1284 = vmatpush.bf16.msra.mxu0 %v1270
        %1285 = vmatmul.bf16.gmra.mxu0 %v1275
        %v1286 = vpop.f32.mrf.mxu0
        %v1287 = vadd.f32 %v1260, %v1286
        %v1288 = vpop.f32.mrf.mxu0
        %1289 = vdwg.mxu0
        %1290 = vst [vmem:[%s510] sm:$0xff] %v1287
        %1291 = vst [vmem:[%s517] sm:$0xff] %v886
        %s1292 = sand.u32 %s329, 1
        %s1293 = scalar_lea.sflag [#allocation3], %s1292
        %s1294 = sand.u32 %s329, 1
        %s1295 = smul.addr %s1294, 8
        %s1296 = scalar_lea.vmem [#allocation2], %s1295
        %s1297 = sand.u32 %s357, 1
        %s1298 = scalar_lea.sflag [#allocation5], %s1297
        %s1299 = sand.u32 %s357, 1
        %s1300 = smul.addr %s1299, 8
        %s1301 = scalar_lea.vmem [#allocation4], %s1300
        // Predicated region
        $region69: #{tpu_custom_call.1} parent=67 // pred_check
          %p1302 = pneg %p339
        $region70: #{tpu_custom_call.1} parent=67 // pred_check_branch
          %1304 = sbr.rel (%p1302) target = $region72
        $region71: #{tpu_custom_call.1} parent=67 // pred_region
          %1306 = vsyncadd %s1293, 0
          %s1307 = sadd.s32 %s36, %s35
          %s1308 = smul.addr %s1307, 8
          %s1309 = scalar_lea.hbm %s12, %s1308
          %s1311 = sshll.u32 %s1296, 4
          %s1312 = int_to_ptr.vmem [resolvable:$true] %s1311
          %s1313 = sshll.u32 %s1309, 4
          %s1314 = int_to_ptr.hbm [resolvable:$true] %s1313
          %1316 = dma.vmem_to_hbm [thread:$0]  %s1312, 128, %s1314, %s1293
        $region72: #{tpu_custom_call.1} parent=67 // pred_fallthru
          _
        // Predicated region
        $region73: #{tpu_custom_call.1} parent=67 // pred_check
          %p1317 = pneg %p367
        $region74: #{tpu_custom_call.1} parent=67 // pred_check_branch
          %1319 = sbr.rel (%p1317) target = $region76
        $region75: #{tpu_custom_call.1} parent=67 // pred_region
          %1321 = vsyncadd %s1298, 0
          %s1322 = sadd.s32 %s36, %s35
          %s1323 = smul.addr %s1322, 8
          %s1324 = scalar_lea.hbm %s13, %s1323
          %s1326 = sshll.u32 %s1301, 4
          %s1327 = int_to_ptr.vmem [resolvable:$true] %s1326
          %s1328 = sshll.u32 %s1324, 4
          %s1329 = int_to_ptr.hbm [resolvable:$true] %s1328
          %1331 = dma.vmem_to_hbm [thread:$0]  %s1327, 128, %s1329, %s1298
        $region76: #{tpu_custom_call.1} parent=67 // pred_fallthru
          _
      $region68: #{tpu_custom_call.1} parent=5 // pred_fallthru
        _
      %p1332 = scmp.le.s32.totalorder 2, %s26
      // Predicated region
      $region77: #{tpu_custom_call.1} parent=5 // pred_check
        %p1333 = pneg %p1332
      $region78: #{tpu_custom_call.1} parent=5 // pred_check_branch
        %1335 = sbr.rel (%p1333) target = $region80
      $region79: #{tpu_custom_call.1} parent=5 // pred_region
        %s1336 = ssub.s32 %s26, 2
        // Predicated region
        $region81: #{tpu_custom_call.1} parent=79 // pred_check
          %p1337 = pneg %p345
        $region82: #{tpu_custom_call.1} parent=79 // pred_check_branch
          %1339 = sbr.rel (%p1337) target = $region84
        $region83: #{tpu_custom_call.1} parent=79 // pred_region
          %s1340 = sand.u32 %s330, 1
          %s1341 = scalar_lea.sflag [#allocation3], %s1340
          %s1342 = sand.u32 %s330, 1
          %s1343 = smul.addr %s1342, 8
          %s1344 = scalar_lea.vmem [#allocation2], %s1343
          %1346 = dma.done %s1341, 128
        $region84: #{tpu_custom_call.1} parent=79 // pred_fallthru
          _
        // Predicated region
        $region85: #{tpu_custom_call.1} parent=79 // pred_check
          %p1347 = pneg %p373
        $region86: #{tpu_custom_call.1} parent=79 // pred_check_branch
          %1349 = sbr.rel (%p1347) target = $region88
        $region87: #{tpu_custom_call.1} parent=79 // pred_region
          %s1350 = sand.u32 %s358, 1
          %s1351 = scalar_lea.sflag [#allocation5], %s1350
          %s1352 = sand.u32 %s358, 1
          %s1353 = smul.addr %s1352, 8
          %s1354 = scalar_lea.vmem [#allocation4], %s1353
          %1356 = dma.done %s1351, 128
        $region88: #{tpu_custom_call.1} parent=79 // pred_fallthru
          _
      $region80: #{tpu_custom_call.1} parent=5 // pred_fallthru
        _
    $region6: #{tpu_custom_call.1} parent=1 // loop_footer
      %s30 = sadd.s32 1, %s26
    $region7: #{tpu_custom_call.1} parent=1 // loop_footer_branch
      %25 = sbr.rel target = $region3
    $region8: #{tpu_custom_call.1} parent=1 // loop_exit
      _
    %1357 = vsyncpa [#allocation3], 1
    %s1358 = scalar_lea.sflag [#allocation3], 1
    %1359 = vsyncpa %s1358, 1
    %1360 = vsyncpa [#allocation5], 1
    %s1361 = scalar_lea.sflag [#allocation5], 1
    %1362 = vsyncpa %s1361, 1

</llo_original>
